<compile_context>
chip_gen: v6e
topology: v6e:2x2x1
jax: 0.10.0
libtpu: 0.0.40
codegen_flags: <defaults>
</compile_context>

<pallas_src>
import numpy as np
import jax
import jax.numpy as jnp
from jax.experimental import pallas as pl
from jax.experimental.pallas import tpu as pltpu

# ------------------------- model hyper-parameters --------------------------
CONV_CH = (8, 16)
CONV_KER = (3, 3)
POOL_KER = (2, 2)
POOL_STRIDE = (2, 2)
DROP_RATE = (0.3, 0.3)
NUM_CLASSES = 10
INPUT_WIDTH = 16
EPS = 1e-5

# derived spatial sizes (same arithmetic as the PyTorch module)
H0 = INPUT_WIDTH + CONV_KER[0] // 2 * 2 - CONV_KER[0] + 1              # 16
P0 = (H0 - POOL_KER[0] + POOL_KER[0] // 2 * 2) // POOL_STRIDE[0] + 1   # 9
H1 = P0 + CONV_KER[1] // 2 * 2 - CONV_KER[1] + 1                       # 9
P1 = (H1 - POOL_KER[1] + POOL_KER[1] // 2 * 2) // POOL_STRIDE[1] + 1   # 5
FEAT = CONV_CH[1] * P1 * P1                                            # 400

C0, C1 = CONV_CH
K = CONV_KER[0]
CIN = 3
LOGIT_LANES = 128          # lane-dense logits slab (sliced to 10 in wrapper)


def _round_up(v, m):
    return (v + m - 1) // m * m


# ----------------------------------------------------------------------------
# Fused forward kernel: one grid step = one batch tile, everything in VMEM.
# Activation layout inside the kernel: (batch, H, W*C) -- W merged into lanes.
# ----------------------------------------------------------------------------
def _fused_forward_kernel(xp_ref, w0_ref, s0_ref, b0_ref,
                          w1_ref, s1_ref, b1_ref, fcw_ref, fcb_ref, o_ref):
    f32 = jnp.float32
    nb = xp_ref.shape[0]

    def hpool(x, h_in, p_out):
        # 2-wide / stride-2 / pad-1 max over H (values >= 0 -> 0-pad == -inf).
        rows = []
        for ph in range(p_out):
            r0, r1 = 2 * ph - 1, 2 * ph
            if r0 < 0:
                rows.append(x[:, r1, :])
            elif r1 >= h_in:
                rows.append(x[:, r0, :])
            else:
                rows.append(jnp.maximum(x[:, r0, :], x[:, r1, :]))
        return jnp.stack(rows, axis=1)

    def wpool(x, w_in, c, p_out):
        # Same pooling over W, which is merged with C on the lane axis.
        cols = []
        for pw in range(p_out):
            j0, j1 = 2 * pw - 1, 2 * pw
            a = x[..., j0 * c:(j0 + 1) * c] if j0 >= 0 else None
            b = x[..., j1 * c:(j1 + 1) * c] if j1 < w_in else None
            if a is None:
                cols.append(b)
            elif b is None:
                cols.append(a)
            else:
                cols.append(jnp.maximum(a, b))
        return jnp.concatenate(cols, axis=-1)

    # ---- conv0 (3x3, pad 1) as ONE matmul on the lane-merged layout --------
    # xp_ref: (nb, H0+2, (H0+2)*CIN) zero-padded input.
    # w0_ref: (3*(H0+2)*CIN, H0*C0) banded weight (built in prepare_params).
    x = xp_ref[...]
    patches0 = jnp.concatenate([x[:, dy:dy + H0, :] for dy in range(K)],
                               axis=-1)                        # (nb, 16, 162)
    patches0 = patches0.reshape(nb * H0, K * (H0 + 2) * CIN)
    y0 = jnp.dot(patches0, w0_ref[...], preferred_element_type=f32)
    y0 = jnp.maximum(y0 * s0_ref[...] + b0_ref[...], 0.0)      # BN(eval)+ReLU
    y0 = y0.reshape(nb, H0, H0 * C0)                           # (nb, 16, 128)
    # (Dropout is identity in eval mode.)

    # ---- maxpool0: 2x2 / stride 2 / pad 1 ----------------------------------
    pooled0 = wpool(hpool(y0, H0, P0), H0, C0, P0)             # (nb, 9, 72)

    # zero-pad pooled0 (1 row / 1 col border) for conv1, still lane-merged
    zc = jnp.zeros((nb, P0, C0), f32)
    p0w = jnp.concatenate([zc, pooled0, zc], axis=-1)          # (nb, 9, 88)
    zr = jnp.zeros((nb, 1, (P0 + 2) * C0), f32)
    p0pad = jnp.concatenate([zr, p0w, zr], axis=1)             # (nb, 11, 88)

    # ---- conv1 (3x3, pad 1) as ONE matmul ----------------------------------
    patches1 = jnp.concatenate([p0pad[:, dy:dy + H1, :] for dy in range(K)],
                               axis=-1)                        # (nb, 9, 264)
    patches1 = patches1.reshape(nb * H1, K * (H1 + 2) * C0)
    y1 = jnp.dot(patches1, w1_ref[...], preferred_element_type=f32)
    y1 = jnp.maximum(y1 * s1_ref[...] + b1_ref[...], 0.0)
    y1 = y1.reshape(nb, H1, H1 * C1)                           # (nb, 9, 144)

    # ---- maxpool1: 2x2 / stride 2 / pad 1 ----------------------------------
    pooled1 = wpool(hpool(y1, H1, P1), H1, C1, P1)             # (nb, 5, 80)

    # ---- fc: single (nb, 400) @ (400, 128) matmul, lane-dense output -------
    flat = pooled1.reshape(nb, P1 * P1 * C1)
    o_ref[...] = (jnp.dot(flat, fcw_ref[...], preferred_element_type=f32)
                  + fcb_ref[...])


# ----------------------------------------------------------------------------
# Parameters (PyTorch layout) + one-time conversion to kernel layout
# ----------------------------------------------------------------------------
def init_params(key):
    def uniform(k, shape, fan_in):
        bound = 1.0 / jnp.sqrt(jnp.float32(fan_in))
        return jax.random.uniform(k, shape, jnp.float32, -bound, bound)

    ks = jax.random.split(key, 6)
    params = {}
    params["conv0_w"] = uniform(ks[0], (C0, CIN, K, K), CIN * K * K)
    params["conv0_b"] = uniform(ks[1], (C0,), CIN * K * K)
    params["bn0_gamma"] = jnp.ones((C0,), jnp.float32)
    params["bn0_beta"] = jnp.zeros((C0,), jnp.float32)
    params["bn0_mean"] = jnp.zeros((C0,), jnp.float32)
    params["bn0_var"] = jnp.ones((C0,), jnp.float32)
    params["conv1_w"] = uniform(ks[2], (C1, C0, K, K), C0 * K * K)
    params["conv1_b"] = uniform(ks[3], (C1,), C0 * K * K)
    params["bn1_gamma"] = jnp.ones((C1,), jnp.float32)
    params["bn1_beta"] = jnp.zeros((C1,), jnp.float32)
    params["bn1_mean"] = jnp.zeros((C1,), jnp.float32)
    params["bn1_var"] = jnp.ones((C1,), jnp.float32)
    params["fc_w"] = uniform(ks[4], (NUM_CLASSES, FEAT), FEAT)
    params["fc_b"] = uniform(ks[5], (NUM_CLASSES,), FEAT)
    return params


def _banded_conv_weight(w_oihw, w_out, cin, cout):
    """Expand an OIHW 3x3 conv weight into the lane-merged banded matrix.

    Row index    = dy*(w_out+2)*cin + wi*cin + ci   (wi = padded input column)
    Column index = wo*cout + c
    so that (nb*h, 3*(w_out+2)*cin) @ banded == conv(pad=1) in (h, w*c) layout.
    """
    w = np.asarray(w_oihw, np.float32)              # (cout, cin, k, k)
    k = w.shape[2]
    w_in = w_out + k - 1
    big = np.zeros((k, w_in, cin, w_out, cout), np.float32)
    for dy in range(k):
        for dx in range(k):
            for wo in range(w_out):
                big[dy, wo + dx, :, wo, :] = w[:, :, dy, dx].T
    return jnp.asarray(big.reshape(k * w_in * cin, w_out * cout))


def prepare_params(params):
    """Fold BN(eval) into scale/shift and pre-expand weights to kernel layout."""
    s0 = params["bn0_gamma"] / jnp.sqrt(params["bn0_var"] + EPS)
    b0 = (params["conv0_b"] - params["bn0_mean"]) * s0 + params["bn0_beta"]
    s1 = params["bn1_gamma"] / jnp.sqrt(params["bn1_var"] + EPS)
    b1 = (params["conv1_b"] - params["bn1_mean"]) * s1 + params["bn1_beta"]
    # fc weight: [10, C1*P1*P1] (PyTorch (c,h,w) flatten) -> [(h,w,c), 10] -> pad
    fcw = jnp.transpose(params["fc_w"].reshape(NUM_CLASSES, C1, P1, P1),
                        (2, 3, 1, 0)).reshape(FEAT, NUM_CLASSES)
    fcw = jnp.pad(fcw, ((0, 0), (0, LOGIT_LANES - NUM_CLASSES)))
    fcb = jnp.pad(params["fc_b"], (0, LOGIT_LANES - NUM_CLASSES))
    return {
        "w0": _banded_conv_weight(params["conv0_w"], H0, CIN, C0),   # (162, 128)
        "s0": jnp.tile(s0, H0).reshape(1, H0 * C0),
        "b0": jnp.tile(b0, H0).reshape(1, H0 * C0),
        "w1": _banded_conv_weight(params["conv1_w"], H1, C0, C1),    # (264, 144)
        "s1": jnp.tile(s1, H1).reshape(1, H1 * C1),
        "b1": jnp.tile(b1, H1).reshape(1, H1 * C1),
        "fc_w": fcw, "fc_b": fcb.reshape(1, LOGIT_LANES),
    }


# ----------------------------------------------------------------------------
# Forward
# ----------------------------------------------------------------------------
def _choose_batch_tile(n):
    # <=8 samples: single grid step (block == full array -> always legal).
    if n <= 8:
        return n, n
    # otherwise: ~32-row tiles, multiple of 8, and >=2 grid steps so both
    # v7x TensorCores get work under dimension_semantics=("parallel",).
    nb = min(32, _round_up(-(-n // 2), 8))
    return nb, _round_up(n, nb)


@jax.jit
def forward(kparams, x_nchw):
    """x_nchw: [N, 3, H, W] float32. Returns (pred, logits)."""
    n = x_nchw.shape[0]
    x = jnp.transpose(x_nchw, (0, 2, 3, 1)).astype(jnp.float32)   # NCHW -> NHWC
    xp = jnp.pad(x, ((0, 0), (1, 1), (1, 1), (0, 0)))             # conv0 zero pad
    xp = xp.reshape(n, H0 + 2, (H0 + 2) * CIN)                    # merge (W, C)
    nb, npad = _choose_batch_tile(n)
    if npad != n:
        xp = jnp.pad(xp, ((0, npad - n), (0, 0), (0, 0)))

    logits = pl.pallas_call(
        _fused_forward_kernel,
        out_shape=jax.ShapeDtypeStruct((npad, LOGIT_LANES), jnp.float32),
        grid=(npad // nb,),
        in_specs=[
            pl.BlockSpec((nb, H0 + 2, (H0 + 2) * CIN), lambda i: (i, 0, 0)),
            pl.BlockSpec((K * (H0 + 2) * CIN, H0 * C0), lambda i: (0, 0)),
            pl.BlockSpec((1, H0 * C0), lambda i: (0, 0)),
            pl.BlockSpec((1, H0 * C0), lambda i: (0, 0)),
            pl.BlockSpec((K * (H1 + 2) * C0, H1 * C1), lambda i: (0, 0)),
            pl.BlockSpec((1, H1 * C1), lambda i: (0, 0)),
            pl.BlockSpec((1, H1 * C1), lambda i: (0, 0)),
            pl.BlockSpec((FEAT, LOGIT_LANES), lambda i: (0, 0)),
            pl.BlockSpec((1, LOGIT_LANES), lambda i: (0, 0)),
        ],
        out_specs=pl.BlockSpec((nb, LOGIT_LANES), lambda i: (i, 0)),
        compiler_params=pltpu.CompilerParams(
            dimension_semantics=("parallel",)),
    )(
        xp, kparams["w0"], kparams["s0"], kparams["b0"],
        kparams["w1"], kparams["s1"], kparams["b1"],
        kparams["fc_w"], kparams["fc_b"],
    )
    logits = logits[:n, :NUM_CLASSES]
    pred = jnp.argmax(logits, axis=1)
    return pred, logits


def forward_with_labels(kparams, x_nchw, y):
    pred, logits = forward(kparams, x_nchw)
    logp = jax.nn.log_softmax(logits, axis=-1)
    loss = -jnp.mean(jnp.take_along_axis(logp, y[:, None], axis=1))
    acc = jnp.mean((pred.astype(jnp.int32) == y.astype(jnp.int32)).astype(jnp.float32))
    return loss, acc


# ----------------------------------------------------------------------------
# Pure-XLA reference of the same eval-mode forward (for correctness check)
# ----------------------------------------------------------------------------
def _reference_forward(params, x_nchw):
    hp = jax.lax.Precision.HIGHEST
    x = jnp.transpose(x_nchw, (0, 2, 3, 1))

    def block(z, w, b, gamma, beta, mean, var):
        w_hwio = jnp.transpose(w, (2, 3, 1, 0))
        y = jax.lax.conv_general_dilated(
            z, w_hwio, (1, 1), "SAME",
            dimension_numbers=("NHWC", "HWIO", "NHWC"), precision=hp) + b
        y = (y - mean) / jnp.sqrt(var + EPS) * gamma + beta
        y = jnp.maximum(y, 0.0)
        yp = jnp.pad(y, ((0, 0), (1, 1), (1, 1), (0, 0)),
                     constant_values=-jnp.inf)
        return jax.lax.reduce_window(yp, -jnp.inf, jax.lax.max,
                                     (1, 2, 2, 1), (1, 2, 2, 1), "VALID")

    x = block(x, params["conv0_w"], params["conv0_b"], params["bn0_gamma"],
              params["bn0_beta"], params["bn0_mean"], params["bn0_var"])
    x = block(x, params["conv1_w"], params["conv1_b"], params["bn1_gamma"],
              params["bn1_beta"], params["bn1_mean"], params["bn1_var"])
    flat = jnp.transpose(x, (0, 3, 1, 2)).reshape(x.shape[0], -1)
    return jnp.dot(flat, params["fc_w"].T, precision=hp) + params["fc_b"]


if __name__ == "__main__":
    key = jax.random.PRNGKey(0)
    kx, kp = jax.random.split(key)
    params = init_params(kp)
    kparams = prepare_params(params)

    x = jax.random.normal(kx, (2, 3, INPUT_WIDTH, INPUT_WIDTH), jnp.float32)

    pred, logits = forward(kparams, x)
    jax.block_until_ready((pred, logits))
    assert pred.shape == (2,) and logits.shape == (2, NUM_CLASSES)

    # numerical check against the pure-XLA reference of the same forward
    ref_logits = _reference_forward(params, x)
    max_err = jnp.max(jnp.abs(logits - ref_logits))
    assert jnp.allclose(logits, ref_logits, rtol=2e-2, atol=2e-2), float(max_err)

    y = jnp.array([1, 7], dtype=jnp.int32)
    loss, acc = forward_with_labels(kparams, x, y)
    jax.block_until_ready((loss, acc))

    print("KERNEL_OK")
</pallas_src>

<mosaic_0001>
module attributes {stable_mosaic.version = 11 : i64} {
  func.func @_fused_forward_kernel(%arg0: i32, %arg1: memref<2x18x54xf32, #tpu.memory_space<vmem>>, %arg2: memref<162x128xf32, #tpu.memory_space<vmem>>, %arg3: memref<1x128xf32, #tpu.memory_space<vmem>>, %arg4: memref<1x128xf32, #tpu.memory_space<vmem>>, %arg5: memref<264x144xf32, #tpu.memory_space<vmem>>, %arg6: memref<1x144xf32, #tpu.memory_space<vmem>>, %arg7: memref<1x144xf32, #tpu.memory_space<vmem>>, %arg8: memref<400x128xf32, #tpu.memory_space<vmem>>, %arg9: memref<1x128xf32, #tpu.memory_space<vmem>>, %arg10: memref<2x128xf32, #tpu.memory_space<vmem>>) attributes {dimension_semantics = [#tpu.dimension_semantics<parallel>], iteration_bounds = array<i64: 1>, scalar_prefetch = 0 : i64, scratch_operands = 0 : i64, tpu.core_type = #tpu.core_type<tc>, window_params = [{transform_indices = @transform_0, window_bounds = array<i64: 2, 18, 54>}, {pipeline_mode = #tpu.pipeline_mode<synchronous>, transform_indices = @transform_1, window_bounds = array<i64: 162, 128>}, {pipeline_mode = #tpu.pipeline_mode<synchronous>, transform_indices = @transform_2, window_bounds = array<i64: 1, 128>}, {pipeline_mode = #tpu.pipeline_mode<synchronous>, transform_indices = @transform_3, window_bounds = array<i64: 1, 128>}, {pipeline_mode = #tpu.pipeline_mode<synchronous>, transform_indices = @transform_4, window_bounds = array<i64: 264, 144>}, {pipeline_mode = #tpu.pipeline_mode<synchronous>, transform_indices = @transform_5, window_bounds = array<i64: 1, 144>}, {pipeline_mode = #tpu.pipeline_mode<synchronous>, transform_indices = @transform_6, window_bounds = array<i64: 1, 144>}, {pipeline_mode = #tpu.pipeline_mode<synchronous>, transform_indices = @transform_7, window_bounds = array<i64: 400, 128>}, {pipeline_mode = #tpu.pipeline_mode<synchronous>, transform_indices = @transform_8, window_bounds = array<i64: 1, 128>}, {transform_indices = @transform_9, window_bounds = array<i64: 2, 128>}]} {
    %c0 = arith.constant 0 : index
    %c0_0 = arith.constant 0 : index
    %c0_1 = arith.constant 0 : index
    %0 = vector.load %arg1[%c0, %c0_0, %c0_1] : memref<2x18x54xf32, #tpu.memory_space<vmem>>, vector<2x18x54xf32>
    %1 = vector.extract_strided_slice %0 {offsets = [0, 0, 0], sizes = [2, 16, 54], strides = [1, 1, 1]} : vector<2x18x54xf32> to vector<2x16x54xf32>
    %2 = vector.extract_strided_slice %0 {offsets = [0, 1, 0], sizes = [2, 16, 54], strides = [1, 1, 1]} : vector<2x18x54xf32> to vector<2x16x54xf32>
    %3 = vector.extract_strided_slice %0 {offsets = [0, 2, 0], sizes = [2, 16, 54], strides = [1, 1, 1]} : vector<2x18x54xf32> to vector<2x16x54xf32>
    %4 = tpu.concatenate %1, %2, %3 in 2 : vector<2x16x54xf32>, vector<2x16x54xf32>, vector<2x16x54xf32> -> vector<2x16x162xf32>
    %5 = vector.shape_cast %4 : vector<2x16x162xf32> to vector<32x162xf32>
    %c0_2 = arith.constant 0 : index
    %c0_3 = arith.constant 0 : index
    %6 = vector.load %arg2[%c0_2, %c0_3] : memref<162x128xf32, #tpu.memory_space<vmem>>, vector<162x128xf32>
    %cst = arith.constant dense<0.000000e+00> : vector<32x128xf32>
    %7 = tpu.matmul %5, %6, %cst {dimension_numbers = #tpu.dot_dimension_numbers<[1], [0], [0], [1], [0, 0, 1, 1], [], []>} : vector<32x162xf32>, vector<162x128xf32>, vector<32x128xf32> -> vector<32x128xf32>
    %c0_4 = arith.constant 0 : index
    %c0_5 = arith.constant 0 : index
    %8 = vector.load %arg3[%c0_4, %c0_5] : memref<1x128xf32, #tpu.memory_space<vmem>>, vector<1x128xf32>
    %9 = vector.broadcast %8 : vector<1x128xf32> to vector<32x128xf32>
    %10 = arith.mulf %7, %9 : vector<32x128xf32>
    %c0_6 = arith.constant 0 : index
    %c0_7 = arith.constant 0 : index
    %11 = vector.load %arg4[%c0_6, %c0_7] : memref<1x128xf32, #tpu.memory_space<vmem>>, vector<1x128xf32>
    %12 = vector.broadcast %11 : vector<1x128xf32> to vector<32x128xf32>
    %13 = arith.addf %10, %12 : vector<32x128xf32>
    %cst_8 = arith.constant 0.000000e+00 : f32
    %14 = vector.broadcast %cst_8 : f32 to vector<32x128xf32>
    %15 = arith.maximumf %13, %14 : vector<32x128xf32>
    %16 = vector.shape_cast %15 : vector<32x128xf32> to vector<2x16x128xf32>
    %17 = vector.extract_strided_slice %16 {offsets = [0, 0, 0], sizes = [2, 1, 128], strides = [1, 1, 1]} : vector<2x16x128xf32> to vector<2x1x128xf32>
    %18 = vector.shape_cast %17 : vector<2x1x128xf32> to vector<2x128xf32>
    %19 = vector.extract_strided_slice %16 {offsets = [0, 1, 0], sizes = [2, 1, 128], strides = [1, 1, 1]} : vector<2x16x128xf32> to vector<2x1x128xf32>
    %20 = vector.shape_cast %19 : vector<2x1x128xf32> to vector<2x128xf32>
    %21 = vector.extract_strided_slice %16 {offsets = [0, 2, 0], sizes = [2, 1, 128], strides = [1, 1, 1]} : vector<2x16x128xf32> to vector<2x1x128xf32>
    %22 = vector.shape_cast %21 : vector<2x1x128xf32> to vector<2x128xf32>
    %23 = arith.maximumf %20, %22 : vector<2x128xf32>
    %24 = vector.extract_strided_slice %16 {offsets = [0, 3, 0], sizes = [2, 1, 128], strides = [1, 1, 1]} : vector<2x16x128xf32> to vector<2x1x128xf32>
    %25 = vector.shape_cast %24 : vector<2x1x128xf32> to vector<2x128xf32>
    %26 = vector.extract_strided_slice %16 {offsets = [0, 4, 0], sizes = [2, 1, 128], strides = [1, 1, 1]} : vector<2x16x128xf32> to vector<2x1x128xf32>
    %27 = vector.shape_cast %26 : vector<2x1x128xf32> to vector<2x128xf32>
    %28 = arith.maximumf %25, %27 : vector<2x128xf32>
    %29 = vector.extract_strided_slice %16 {offsets = [0, 5, 0], sizes = [2, 1, 128], strides = [1, 1, 1]} : vector<2x16x128xf32> to vector<2x1x128xf32>
    %30 = vector.shape_cast %29 : vector<2x1x128xf32> to vector<2x128xf32>
    %31 = vector.extract_strided_slice %16 {offsets = [0, 6, 0], sizes = [2, 1, 128], strides = [1, 1, 1]} : vector<2x16x128xf32> to vector<2x1x128xf32>
    %32 = vector.shape_cast %31 : vector<2x1x128xf32> to vector<2x128xf32>
    %33 = arith.maximumf %30, %32 : vector<2x128xf32>
    %34 = vector.extract_strided_slice %16 {offsets = [0, 7, 0], sizes = [2, 1, 128], strides = [1, 1, 1]} : vector<2x16x128xf32> to vector<2x1x128xf32>
    %35 = vector.shape_cast %34 : vector<2x1x128xf32> to vector<2x128xf32>
    %36 = vector.extract_strided_slice %16 {offsets = [0, 8, 0], sizes = [2, 1, 128], strides = [1, 1, 1]} : vector<2x16x128xf32> to vector<2x1x128xf32>
    %37 = vector.shape_cast %36 : vector<2x1x128xf32> to vector<2x128xf32>
    %38 = arith.maximumf %35, %37 : vector<2x128xf32>
    %39 = vector.extract_strided_slice %16 {offsets = [0, 9, 0], sizes = [2, 1, 128], strides = [1, 1, 1]} : vector<2x16x128xf32> to vector<2x1x128xf32>
    %40 = vector.shape_cast %39 : vector<2x1x128xf32> to vector<2x128xf32>
    %41 = vector.extract_strided_slice %16 {offsets = [0, 10, 0], sizes = [2, 1, 128], strides = [1, 1, 1]} : vector<2x16x128xf32> to vector<2x1x128xf32>
    %42 = vector.shape_cast %41 : vector<2x1x128xf32> to vector<2x128xf32>
    %43 = arith.maximumf %40, %42 : vector<2x128xf32>
    %44 = vector.extract_strided_slice %16 {offsets = [0, 11, 0], sizes = [2, 1, 128], strides = [1, 1, 1]} : vector<2x16x128xf32> to vector<2x1x128xf32>
    %45 = vector.shape_cast %44 : vector<2x1x128xf32> to vector<2x128xf32>
    %46 = vector.extract_strided_slice %16 {offsets = [0, 12, 0], sizes = [2, 1, 128], strides = [1, 1, 1]} : vector<2x16x128xf32> to vector<2x1x128xf32>
    %47 = vector.shape_cast %46 : vector<2x1x128xf32> to vector<2x128xf32>
    %48 = arith.maximumf %45, %47 : vector<2x128xf32>
    %49 = vector.extract_strided_slice %16 {offsets = [0, 13, 0], sizes = [2, 1, 128], strides = [1, 1, 1]} : vector<2x16x128xf32> to vector<2x1x128xf32>
    %50 = vector.shape_cast %49 : vector<2x1x128xf32> to vector<2x128xf32>
    %51 = vector.extract_strided_slice %16 {offsets = [0, 14, 0], sizes = [2, 1, 128], strides = [1, 1, 1]} : vector<2x16x128xf32> to vector<2x1x128xf32>
    %52 = vector.shape_cast %51 : vector<2x1x128xf32> to vector<2x128xf32>
    %53 = arith.maximumf %50, %52 : vector<2x128xf32>
    %54 = vector.extract_strided_slice %16 {offsets = [0, 15, 0], sizes = [2, 1, 128], strides = [1, 1, 1]} : vector<2x16x128xf32> to vector<2x1x128xf32>
    %55 = vector.shape_cast %54 : vector<2x1x128xf32> to vector<2x128xf32>
    %56 = vector.shape_cast %18 : vector<2x128xf32> to vector<2x1x128xf32>
    %57 = vector.shape_cast %23 : vector<2x128xf32> to vector<2x1x128xf32>
    %58 = vector.shape_cast %28 : vector<2x128xf32> to vector<2x1x128xf32>
    %59 = vector.shape_cast %33 : vector<2x128xf32> to vector<2x1x128xf32>
    %60 = vector.shape_cast %38 : vector<2x128xf32> to vector<2x1x128xf32>
    %61 = vector.shape_cast %43 : vector<2x128xf32> to vector<2x1x128xf32>
    %62 = vector.shape_cast %48 : vector<2x128xf32> to vector<2x1x128xf32>
    %63 = vector.shape_cast %53 : vector<2x128xf32> to vector<2x1x128xf32>
    %64 = vector.shape_cast %55 : vector<2x128xf32> to vector<2x1x128xf32>
    %65 = tpu.concatenate %56, %57, %58, %59, %60, %61, %62, %63, %64 in 1 : vector<2x1x128xf32>, vector<2x1x128xf32>, vector<2x1x128xf32>, vector<2x1x128xf32>, vector<2x1x128xf32>, vector<2x1x128xf32>, vector<2x1x128xf32>, vector<2x1x128xf32>, vector<2x1x128xf32> -> vector<2x9x128xf32>
    %66 = vector.extract_strided_slice %65 {offsets = [0, 0, 0], sizes = [2, 9, 8], strides = [1, 1, 1]} : vector<2x9x128xf32> to vector<2x9x8xf32>
    %67 = vector.extract_strided_slice %65 {offsets = [0, 0, 8], sizes = [2, 9, 8], strides = [1, 1, 1]} : vector<2x9x128xf32> to vector<2x9x8xf32>
    %68 = vector.extract_strided_slice %65 {offsets = [0, 0, 16], sizes = [2, 9, 8], strides = [1, 1, 1]} : vector<2x9x128xf32> to vector<2x9x8xf32>
    %69 = arith.maximumf %67, %68 : vector<2x9x8xf32>
    %70 = vector.extract_strided_slice %65 {offsets = [0, 0, 24], sizes = [2, 9, 8], strides = [1, 1, 1]} : vector<2x9x128xf32> to vector<2x9x8xf32>
    %71 = vector.extract_strided_slice %65 {offsets = [0, 0, 32], sizes = [2, 9, 8], strides = [1, 1, 1]} : vector<2x9x128xf32> to vector<2x9x8xf32>
    %72 = arith.maximumf %70, %71 : vector<2x9x8xf32>
    %73 = vector.extract_strided_slice %65 {offsets = [0, 0, 40], sizes = [2, 9, 8], strides = [1, 1, 1]} : vector<2x9x128xf32> to vector<2x9x8xf32>
    %74 = vector.extract_strided_slice %65 {offsets = [0, 0, 48], sizes = [2, 9, 8], strides = [1, 1, 1]} : vector<2x9x128xf32> to vector<2x9x8xf32>
    %75 = arith.maximumf %73, %74 : vector<2x9x8xf32>
    %76 = vector.extract_strided_slice %65 {offsets = [0, 0, 56], sizes = [2, 9, 8], strides = [1, 1, 1]} : vector<2x9x128xf32> to vector<2x9x8xf32>
    %77 = vector.extract_strided_slice %65 {offsets = [0, 0, 64], sizes = [2, 9, 8], strides = [1, 1, 1]} : vector<2x9x128xf32> to vector<2x9x8xf32>
    %78 = arith.maximumf %76, %77 : vector<2x9x8xf32>
    %79 = vector.extract_strided_slice %65 {offsets = [0, 0, 72], sizes = [2, 9, 8], strides = [1, 1, 1]} : vector<2x9x128xf32> to vector<2x9x8xf32>
    %80 = vector.extract_strided_slice %65 {offsets = [0, 0, 80], sizes = [2, 9, 8], strides = [1, 1, 1]} : vector<2x9x128xf32> to vector<2x9x8xf32>
    %81 = arith.maximumf %79, %80 : vector<2x9x8xf32>
    %82 = vector.extract_strided_slice %65 {offsets = [0, 0, 88], sizes = [2, 9, 8], strides = [1, 1, 1]} : vector<2x9x128xf32> to vector<2x9x8xf32>
    %83 = vector.extract_strided_slice %65 {offsets = [0, 0, 96], sizes = [2, 9, 8], strides = [1, 1, 1]} : vector<2x9x128xf32> to vector<2x9x8xf32>
    %84 = arith.maximumf %82, %83 : vector<2x9x8xf32>
    %85 = vector.extract_strided_slice %65 {offsets = [0, 0, 104], sizes = [2, 9, 8], strides = [1, 1, 1]} : vector<2x9x128xf32> to vector<2x9x8xf32>
    %86 = vector.extract_strided_slice %65 {offsets = [0, 0, 112], sizes = [2, 9, 8], strides = [1, 1, 1]} : vector<2x9x128xf32> to vector<2x9x8xf32>
    %87 = arith.maximumf %85, %86 : vector<2x9x8xf32>
    %88 = vector.extract_strided_slice %65 {offsets = [0, 0, 120], sizes = [2, 9, 8], strides = [1, 1, 1]} : vector<2x9x128xf32> to vector<2x9x8xf32>
    %89 = tpu.concatenate %66, %69, %72, %75, %78, %81, %84, %87, %88 in 2 : vector<2x9x8xf32>, vector<2x9x8xf32>, vector<2x9x8xf32>, vector<2x9x8xf32>, vector<2x9x8xf32>, vector<2x9x8xf32>, vector<2x9x8xf32>, vector<2x9x8xf32>, vector<2x9x8xf32> -> vector<2x9x72xf32>
    %cst_9 = arith.constant 0.000000e+00 : f32
    %90 = vector.broadcast %cst_9 : f32 to vector<2x9x8xf32>
    %91 = tpu.concatenate %90, %89, %90 in 2 : vector<2x9x8xf32>, vector<2x9x72xf32>, vector<2x9x8xf32> -> vector<2x9x88xf32>
    %cst_10 = arith.constant 0.000000e+00 : f32
    %92 = vector.broadcast %cst_10 : f32 to vector<2x1x88xf32>
    %93 = tpu.concatenate %92, %91, %92 in 1 : vector<2x1x88xf32>, vector<2x9x88xf32>, vector<2x1x88xf32> -> vector<2x11x88xf32>
    %94 = vector.extract_strided_slice %93 {offsets = [0, 0, 0], sizes = [2, 9, 88], strides = [1, 1, 1]} : vector<2x11x88xf32> to vector<2x9x88xf32>
    %95 = vector.extract_strided_slice %93 {offsets = [0, 1, 0], sizes = [2, 9, 88], strides = [1, 1, 1]} : vector<2x11x88xf32> to vector<2x9x88xf32>
    %96 = vector.extract_strided_slice %93 {offsets = [0, 2, 0], sizes = [2, 9, 88], strides = [1, 1, 1]} : vector<2x11x88xf32> to vector<2x9x88xf32>
    %97 = tpu.concatenate %94, %95, %96 in 2 : vector<2x9x88xf32>, vector<2x9x88xf32>, vector<2x9x88xf32> -> vector<2x9x264xf32>
    %98 = vector.shape_cast %97 : vector<2x9x264xf32> to vector<18x264xf32>
    %c0_11 = arith.constant 0 : index
    %c0_12 = arith.constant 0 : index
    %99 = vector.load %arg5[%c0_11, %c0_12] : memref<264x144xf32, #tpu.memory_space<vmem>>, vector<264x144xf32>
    %cst_13 = arith.constant dense<0.000000e+00> : vector<18x144xf32>
    %100 = tpu.matmul %98, %99, %cst_13 {dimension_numbers = #tpu.dot_dimension_numbers<[1], [0], [0], [1], [0, 0, 1, 1], [], []>} : vector<18x264xf32>, vector<264x144xf32>, vector<18x144xf32> -> vector<18x144xf32>
    %c0_14 = arith.constant 0 : index
    %c0_15 = arith.constant 0 : index
    %101 = vector.load %arg6[%c0_14, %c0_15] : memref<1x144xf32, #tpu.memory_space<vmem>>, vector<1x144xf32>
    %102 = vector.broadcast %101 : vector<1x144xf32> to vector<18x144xf32>
    %103 = arith.mulf %100, %102 : vector<18x144xf32>
    %c0_16 = arith.constant 0 : index
    %c0_17 = arith.constant 0 : index
    %104 = vector.load %arg7[%c0_16, %c0_17] : memref<1x144xf32, #tpu.memory_space<vmem>>, vector<1x144xf32>
    %105 = vector.broadcast %104 : vector<1x144xf32> to vector<18x144xf32>
    %106 = arith.addf %103, %105 : vector<18x144xf32>
    %cst_18 = arith.constant 0.000000e+00 : f32
    %107 = vector.broadcast %cst_18 : f32 to vector<18x144xf32>
    %108 = arith.maximumf %106, %107 : vector<18x144xf32>
    %109 = vector.shape_cast %108 : vector<18x144xf32> to vector<2x9x144xf32>
    %110 = vector.extract_strided_slice %109 {offsets = [0, 0, 0], sizes = [2, 1, 144], strides = [1, 1, 1]} : vector<2x9x144xf32> to vector<2x1x144xf32>
    %111 = vector.shape_cast %110 : vector<2x1x144xf32> to vector<2x144xf32>
    %112 = vector.extract_strided_slice %109 {offsets = [0, 1, 0], sizes = [2, 1, 144], strides = [1, 1, 1]} : vector<2x9x144xf32> to vector<2x1x144xf32>
    %113 = vector.shape_cast %112 : vector<2x1x144xf32> to vector<2x144xf32>
    %114 = vector.extract_strided_slice %109 {offsets = [0, 2, 0], sizes = [2, 1, 144], strides = [1, 1, 1]} : vector<2x9x144xf32> to vector<2x1x144xf32>
    %115 = vector.shape_cast %114 : vector<2x1x144xf32> to vector<2x144xf32>
    %116 = arith.maximumf %113, %115 : vector<2x144xf32>
    %117 = vector.extract_strided_slice %109 {offsets = [0, 3, 0], sizes = [2, 1, 144], strides = [1, 1, 1]} : vector<2x9x144xf32> to vector<2x1x144xf32>
    %118 = vector.shape_cast %117 : vector<2x1x144xf32> to vector<2x144xf32>
    %119 = vector.extract_strided_slice %109 {offsets = [0, 4, 0], sizes = [2, 1, 144], strides = [1, 1, 1]} : vector<2x9x144xf32> to vector<2x1x144xf32>
    %120 = vector.shape_cast %119 : vector<2x1x144xf32> to vector<2x144xf32>
    %121 = arith.maximumf %118, %120 : vector<2x144xf32>
    %122 = vector.extract_strided_slice %109 {offsets = [0, 5, 0], sizes = [2, 1, 144], strides = [1, 1, 1]} : vector<2x9x144xf32> to vector<2x1x144xf32>
    %123 = vector.shape_cast %122 : vector<2x1x144xf32> to vector<2x144xf32>
    %124 = vector.extract_strided_slice %109 {offsets = [0, 6, 0], sizes = [2, 1, 144], strides = [1, 1, 1]} : vector<2x9x144xf32> to vector<2x1x144xf32>
    %125 = vector.shape_cast %124 : vector<2x1x144xf32> to vector<2x144xf32>
    %126 = arith.maximumf %123, %125 : vector<2x144xf32>
    %127 = vector.extract_strided_slice %109 {offsets = [0, 7, 0], sizes = [2, 1, 144], strides = [1, 1, 1]} : vector<2x9x144xf32> to vector<2x1x144xf32>
    %128 = vector.shape_cast %127 : vector<2x1x144xf32> to vector<2x144xf32>
    %129 = vector.extract_strided_slice %109 {offsets = [0, 8, 0], sizes = [2, 1, 144], strides = [1, 1, 1]} : vector<2x9x144xf32> to vector<2x1x144xf32>
    %130 = vector.shape_cast %129 : vector<2x1x144xf32> to vector<2x144xf32>
    %131 = arith.maximumf %128, %130 : vector<2x144xf32>
    %132 = vector.shape_cast %111 : vector<2x144xf32> to vector<2x1x144xf32>
    %133 = vector.shape_cast %116 : vector<2x144xf32> to vector<2x1x144xf32>
    %134 = vector.shape_cast %121 : vector<2x144xf32> to vector<2x1x144xf32>
    %135 = vector.shape_cast %126 : vector<2x144xf32> to vector<2x1x144xf32>
    %136 = vector.shape_cast %131 : vector<2x144xf32> to vector<2x1x144xf32>
    %137 = tpu.concatenate %132, %133, %134, %135, %136 in 1 : vector<2x1x144xf32>, vector<2x1x144xf32>, vector<2x1x144xf32>, vector<2x1x144xf32>, vector<2x1x144xf32> -> vector<2x5x144xf32>
    %138 = vector.extract_strided_slice %137 {offsets = [0, 0, 0], sizes = [2, 5, 16], strides = [1, 1, 1]} : vector<2x5x144xf32> to vector<2x5x16xf32>
    %139 = vector.extract_strided_slice %137 {offsets = [0, 0, 16], sizes = [2, 5, 16], strides = [1, 1, 1]} : vector<2x5x144xf32> to vector<2x5x16xf32>
    %140 = vector.extract_strided_slice %137 {offsets = [0, 0, 32], sizes = [2, 5, 16], strides = [1, 1, 1]} : vector<2x5x144xf32> to vector<2x5x16xf32>
    %141 = arith.maximumf %139, %140 : vector<2x5x16xf32>
    %142 = vector.extract_strided_slice %137 {offsets = [0, 0, 48], sizes = [2, 5, 16], strides = [1, 1, 1]} : vector<2x5x144xf32> to vector<2x5x16xf32>
    %143 = vector.extract_strided_slice %137 {offsets = [0, 0, 64], sizes = [2, 5, 16], strides = [1, 1, 1]} : vector<2x5x144xf32> to vector<2x5x16xf32>
    %144 = arith.maximumf %142, %143 : vector<2x5x16xf32>
    %145 = vector.extract_strided_slice %137 {offsets = [0, 0, 80], sizes = [2, 5, 16], strides = [1, 1, 1]} : vector<2x5x144xf32> to vector<2x5x16xf32>
    %146 = vector.extract_strided_slice %137 {offsets = [0, 0, 96], sizes = [2, 5, 16], strides = [1, 1, 1]} : vector<2x5x144xf32> to vector<2x5x16xf32>
    %147 = arith.maximumf %145, %146 : vector<2x5x16xf32>
    %148 = vector.extract_strided_slice %137 {offsets = [0, 0, 112], sizes = [2, 5, 16], strides = [1, 1, 1]} : vector<2x5x144xf32> to vector<2x5x16xf32>
    %149 = vector.extract_strided_slice %137 {offsets = [0, 0, 128], sizes = [2, 5, 16], strides = [1, 1, 1]} : vector<2x5x144xf32> to vector<2x5x16xf32>
    %150 = arith.maximumf %148, %149 : vector<2x5x16xf32>
    %151 = tpu.concatenate %138, %141, %144, %147, %150 in 2 : vector<2x5x16xf32>, vector<2x5x16xf32>, vector<2x5x16xf32>, vector<2x5x16xf32>, vector<2x5x16xf32> -> vector<2x5x80xf32>
    %152 = vector.shape_cast %151 : vector<2x5x80xf32> to vector<2x400xf32>
    %c0_19 = arith.constant 0 : index
    %c0_20 = arith.constant 0 : index
    %153 = vector.load %arg8[%c0_19, %c0_20] : memref<400x128xf32, #tpu.memory_space<vmem>>, vector<400x128xf32>
    %cst_21 = arith.constant dense<0.000000e+00> : vector<2x128xf32>
    %154 = tpu.matmul %152, %153, %cst_21 {dimension_numbers = #tpu.dot_dimension_numbers<[1], [0], [0], [1], [0, 0, 1, 1], [], []>} : vector<2x400xf32>, vector<400x128xf32>, vector<2x128xf32> -> vector<2x128xf32>
    %c0_22 = arith.constant 0 : index
    %c0_23 = arith.constant 0 : index
    %155 = vector.load %arg9[%c0_22, %c0_23] : memref<1x128xf32, #tpu.memory_space<vmem>>, vector<1x128xf32>
    %156 = vector.broadcast %155 : vector<1x128xf32> to vector<2x128xf32>
    %157 = arith.addf %154, %156 : vector<2x128xf32>
    %c0_24 = arith.constant 0 : index
    %c0_25 = arith.constant 0 : index
    %158 = vector.load %arg10[%c0_24, %c0_25] : memref<2x128xf32, #tpu.memory_space<vmem>>, vector<2x128xf32>
    tpu.vector_store %arg10[%c0_24, %c0_25], %157 {strides = array<i32>} : memref<2x128xf32, #tpu.memory_space<vmem>>, vector<2x128xf32>,
    return
  }
  func.func @transform_0(%arg0: i32) -> (i32, i32, i32) {
    %c0_i32 = arith.constant 0 : i32
    %c0_i32_0 = arith.constant 0 : i32
    %c0_i32_1 = arith.constant 0 : i32
    return %arg0, %c0_i32, %c0_i32_0 : i32, i32, i32
  }
  func.func @transform_1(%arg0: i32) -> (i32, i32) {
    %c0_i32 = arith.constant 0 : i32
    %c0_i32_0 = arith.constant 0 : i32
    %c0_i32_1 = arith.constant 0 : i32
    return %c0_i32, %c0_i32_0 : i32, i32
  }
  func.func @transform_2(%arg0: i32) -> (i32, i32) {
    %c0_i32 = arith.constant 0 : i32
    %c0_i32_0 = arith.constant 0 : i32
    %c0_i32_1 = arith.constant 0 : i32
    return %c0_i32, %c0_i32_0 : i32, i32
  }
  func.func @transform_3(%arg0: i32) -> (i32, i32) {
    %c0_i32 = arith.constant 0 : i32
    %c0_i32_0 = arith.constant 0 : i32
    %c0_i32_1 = arith.constant 0 : i32
    return %c0_i32, %c0_i32_0 : i32, i32
  }
  func.func @transform_4(%arg0: i32) -> (i32, i32) {
    %c0_i32 = arith.constant 0 : i32
    %c0_i32_0 = arith.constant 0 : i32
    %c0_i32_1 = arith.constant 0 : i32
    return %c0_i32, %c0_i32_0 : i32, i32
  }
  func.func @transform_5(%arg0: i32) -> (i32, i32) {
    %c0_i32 = arith.constant 0 : i32
    %c0_i32_0 = arith.constant 0 : i32
    %c0_i32_1 = arith.constant 0 : i32
    return %c0_i32, %c0_i32_0 : i32, i32
  }
  func.func @transform_6(%arg0: i32) -> (i32, i32) {
    %c0_i32 = arith.constant 0 : i32
    %c0_i32_0 = arith.constant 0 : i32
    %c0_i32_1 = arith.constant 0 : i32
    return %c0_i32, %c0_i32_0 : i32, i32
  }
  func.func @transform_7(%arg0: i32) -> (i32, i32) {
    %c0_i32 = arith.constant 0 : i32
    %c0_i32_0 = arith.constant 0 : i32
    %c0_i32_1 = arith.constant 0 : i32
    return %c0_i32, %c0_i32_0 : i32, i32
  }
  func.func @transform_8(%arg0: i32) -> (i32, i32) {
    %c0_i32 = arith.constant 0 : i32
    %c0_i32_0 = arith.constant 0 : i32
    %c0_i32_1 = arith.constant 0 : i32
    return %c0_i32, %c0_i32_0 : i32, i32
  }
  func.func @transform_9(%arg0: i32) -> (i32, i32) {
    %c0_i32 = arith.constant 0 : i32
    %c0_i32_0 = arith.constant 0 : i32
    return %arg0, %c0_i32 : i32, i32
  }
}

</mosaic_0001>

<llo_original>
// kernel: forward.1
$region0: #{forward.1}
  #allocation0 [shape = 'u32[]', space=smem, size = 0x4, offset = 0x4, fixed_abs, tag = 'smem constant byte address 0x4 - core index']
  #allocation1 [shape = 'u32[144,128]{1,0:T(1,128)}', space=vmem, size = 0x12000, scoped, tag = 'internal scratch']
  %s0 = inlined_call_operand.vmem [shape: f32[2,18,54], index: 0, kind: input, shape index: {}]
  %s1 = inlined_call_operand.vmem [shape: f32[162,128], index: 1, kind: input, shape index: {}]
  %s2 = inlined_call_operand.vmem [shape: f32[1,128], index: 2, kind: input, shape index: {}]
  %s3 = inlined_call_operand.vmem [shape: f32[1,128], index: 3, kind: input, shape index: {}]
  %s4 = inlined_call_operand.vmem [shape: f32[264,144], index: 4, kind: input, shape index: {}]
  %s5 = inlined_call_operand.vmem [shape: f32[1,144], index: 5, kind: input, shape index: {}]
  %s6 = inlined_call_operand.vmem [shape: f32[1,144], index: 6, kind: input, shape index: {}]
  %s7 = inlined_call_operand.vmem [shape: f32[400,128], index: 7, kind: input, shape index: {}]
  %s8 = inlined_call_operand.vmem [shape: f32[1,128], index: 8, kind: input, shape index: {}]
  %s9 = inlined_call_operand.vmem [shape: f32[2,128], index: 9, kind: output, shape index: {}]
  %s10 = sld [smem:[#allocation0]]
  $region46: #{forward.1} parent=0
    _
  %s12 = ssub.s32 1, %s10
  %s13 = scalar_select 0, %s12, %s10
  // Predicated region
  $region2: #{forward.1} parent=0 // pred_check
    _
  $region3: #{forward.1} parent=0 // pred_check_branch
    %15 = sbr.rel (0) target = $region5
  $region4: #{forward.1} parent=0 // pred_region
    _
  $region5: #{forward.1} parent=0 // pred_fallthru
    _
  // Predicated region
  $region6: #{forward.1} parent=0 // pred_check
    _
  $region7: #{forward.1} parent=0 // pred_check_branch
    %17 = sbr.rel (0) target = $region9
  $region8: #{forward.1} parent=0 // pred_region
    _
  $region9: #{forward.1} parent=0 // pred_fallthru
    _
  // Predicated region
  $region10: #{forward.1} parent=0 // pred_check
    _
  $region11: #{forward.1} parent=0 // pred_check_branch
    %19 = sbr.rel (0) target = $region13
  $region12: #{forward.1} parent=0 // pred_region
    _
  $region13: #{forward.1} parent=0 // pred_fallthru
    _
  // Predicated region
  $region14: #{forward.1} parent=0 // pred_check
    _
  $region15: #{forward.1} parent=0 // pred_check_branch
    %21 = sbr.rel (0) target = $region17
  $region16: #{forward.1} parent=0 // pred_region
    _
  $region17: #{forward.1} parent=0 // pred_fallthru
    _
  // Predicated region
  $region18: #{forward.1} parent=0 // pred_check
    _
  $region19: #{forward.1} parent=0 // pred_check_branch
    %23 = sbr.rel (0) target = $region21
  $region20: #{forward.1} parent=0 // pred_region
    _
  $region21: #{forward.1} parent=0 // pred_fallthru
    _
  // Predicated region
  $region22: #{forward.1} parent=0 // pred_check
    _
  $region23: #{forward.1} parent=0 // pred_check_branch
    %25 = sbr.rel (0) target = $region25
  $region24: #{forward.1} parent=0 // pred_region
    _
  $region25: #{forward.1} parent=0 // pred_fallthru
    _
  // Predicated region
  $region26: #{forward.1} parent=0 // pred_check
    _
  $region27: #{forward.1} parent=0 // pred_check_branch
    %27 = sbr.rel (0) target = $region29
  $region28: #{forward.1} parent=0 // pred_region
    _
  $region29: #{forward.1} parent=0 // pred_fallthru
    _
  // Predicated region
  $region30: #{forward.1} parent=0 // pred_check
    _
  $region31: #{forward.1} parent=0 // pred_check_branch
    %29 = sbr.rel (0) target = $region33
  $region32: #{forward.1} parent=0 // pred_region
    _
  $region33: #{forward.1} parent=0 // pred_fallthru
    _
  // Predicated region
  $region34: #{forward.1} parent=0 // pred_check
    _
  $region35: #{forward.1} parent=0 // pred_check_branch
    %31 = sbr.rel (0) target = $region37
  $region36: #{forward.1} parent=0 // pred_region
    _
  $region37: #{forward.1} parent=0 // pred_fallthru
    _
  %v32 = vld [vmem:[%s0] sm:$0xff]
  %v33 = vld [vmem:[%s0 + $0x8] sm:$0xff]
  %v34 = vld [vmem:[%s0 + $0x10] sm:$0x3]
  %v35 = vld [vmem:[%s0 + $0x18] sm:$0xff]
  %v36 = vld [vmem:[%s0 + $0x20] sm:$0xff]
  %v37 = vld [vmem:[%s0 + $0x28] sm:$0x3]
  %vm44 = vcmask 1046528
  %v45 = vrot.slane %v32, 1
  %v46 = vrot.slane %v33, 1
  %v47 = vsel %vm44, %v45, %v46
  %v48 = vrot.slane %v34, 1
  %v49 = vsel %vm44, %v46, %v48
  %v50 = vrot.slane %v35, 1
  %v51 = vrot.slane %v36, 1
  %v52 = vsel %vm44, %v50, %v51
  %v53 = vrot.slane %v37, 1
  %v54 = vsel %vm44, %v51, %v53
  %55 = vrot.lane.b32.xlu0 %v47, 54
  %v56 = vpop.permute.xlu0 %55
  %57 = vrot.lane.b32.xlu0 %v49, 54
  %v58 = vpop.permute.xlu0 %57
  %59 = vrot.lane.b32.xlu0 %v52, 54
  %v60 = vpop.permute.xlu0 %59
  %61 = vrot.lane.b32.xlu0 %v54, 54
  %v62 = vpop.permute.xlu0 %61
  %vm67 = vcmask 1045504
  %v68 = vrot.slane %v32, 2
  %v69 = vrot.slane %v33, 2
  %v70 = vsel %vm67, %v68, %v69
  %v71 = vrot.slane %v34, 2
  %v72 = vsel %vm67, %v69, %v71
  %v73 = vrot.slane %v35, 2
  %v74 = vrot.slane %v36, 2
  %v75 = vsel %vm67, %v73, %v74
  %v76 = vrot.slane %v37, 2
  %v77 = vsel %vm67, %v74, %v76
  %78 = vrot.lane.b32.xlu0 %v70, 108
  %v79 = vpop.permute.xlu0 %78
  %80 = vrot.lane.b32.xlu0 %v72, 108
  %v81 = vpop.permute.xlu0 %80
  %82 = vrot.lane.b32.xlu0 %v75, 108
  %v83 = vpop.permute.xlu0 %82
  %84 = vrot.lane.b32.xlu0 %v77, 108
  %v85 = vpop.permute.xlu0 %84
  %vm90 = vcmask 441344
  %v91 = vsel %vm90, %v32, %v56
  %v92 = vsel %vm90, %v33, %v58
  %v93 = vsel %vm90, %v35, %v60
  %v94 = vsel %vm90, %v36, %v62
  %vm95 = vcmask 883712
  %v96 = vsel %vm95, %v91, %v79
  %v97 = vsel %vm95, %v92, %v81
  %v98 = vsel %vm95, %v93, %v83
  %v99 = vsel %vm95, %v94, %v85
  %v100 = vld [vmem:[%s1] sm:$0xff]
  %v101 = vld [vmem:[%s1 + $0x8] sm:$0xff]
  %v102 = vld [vmem:[%s1 + $0x10] sm:$0xff]
  %v103 = vld [vmem:[%s1 + $0x18] sm:$0xff]
  %v104 = vld [vmem:[%s1 + $0x20] sm:$0xff]
  %v105 = vld [vmem:[%s1 + $0x28] sm:$0xff]
  %v106 = vld [vmem:[%s1 + $0x30] sm:$0xff]
  %v107 = vld [vmem:[%s1 + $0x38] sm:$0xff]
  %v108 = vld [vmem:[%s1 + $0x40] sm:$0xff]
  %v109 = vld [vmem:[%s1 + $0x48] sm:$0xff]
  %v110 = vld [vmem:[%s1 + $0x50] sm:$0xff]
  %v111 = vld [vmem:[%s1 + $0x58] sm:$0xff]
  %v112 = vld [vmem:[%s1 + $0x60] sm:$0xff]
  %v113 = vld [vmem:[%s1 + $0x68] sm:$0xff]
  %v114 = vld [vmem:[%s1 + $0x70] sm:$0xff]
  %v115 = vld [vmem:[%s1 + $0x78] sm:$0xff]
  %v116 = vld [vmem:[%s1 + $0x80] sm:$0xff]
  %v117 = vld [vmem:[%s1 + $0x88] sm:$0xff]
  %v118 = vld [vmem:[%s1 + $0x90] sm:$0xff]
  %v119 = vld [vmem:[%s1 + $0x98] sm:$0xff]
  %v120 = vld [vmem:[%s1 + $0xa0] sm:$0x3]
  %vm121 = vcmask 277504
  %v122 = vsel %vm121, %v79, 0
  %v124 = vsel %vm121, %v81, 0
  %v126 = vsel %vm121, %v83, 0
  %v128 = vsel %vm121, %v85, 0
  %vm130 = vcmask 1041408
  %v132 = vsel %vm130, %v120, 0
  %134 = vmatprep.subr.mxu0 0.0
  %135 = vmatpush1.msra.mxu0 %v115
  %136 = vmatprep.subr.mxu0 0.0
  %137 = vmatpush1.msra.mxu0 %v114
  %138 = vmatprep.subr.mxu0 0.0
  %139 = vmatpush1.msra.mxu0 %v113
  %140 = vmatprep.subr.mxu0 0.0
  %141 = vmatpush1.msra.mxu0 %v112
  %142 = vmatprep.subr.mxu0 0.0
  %143 = vmatpush1.msra.mxu0 %v111
  %144 = vmatprep.subr.mxu0 0.0
  %145 = vmatpush1.msra.mxu0 %v110
  %146 = vmatprep.subr.mxu0 0.0
  %147 = vmatpush1.msra.mxu0 %v109
  %148 = vmatprep.subr.mxu0 0.0
  %149 = vmatpush1.msra.mxu0 %v108
  %150 = vmatprep.subr.mxu0 0.0
  %151 = vmatpush1.msra.mxu0 %v107
  %152 = vmatprep.subr.mxu0 0.0
  %153 = vmatpush1.msra.mxu0 %v106
  %154 = vmatprep.subr.mxu0 0.0
  %155 = vmatpush1.msra.mxu0 %v105
  %156 = vmatprep.subr.mxu0 0.0
  %157 = vmatpush1.msra.mxu0 %v104
  %158 = vmatprep.subr.mxu0 0.0
  %159 = vmatpush1.msra.mxu0 %v103
  %160 = vmatprep.subr.mxu0 0.0
  %161 = vmatpush1.msra.mxu0 %v102
  %162 = vmatprep.subr.mxu0 0.0
  %163 = vmatpush1.msra.mxu0 %v101
  %164 = vmatprep.subr.mxu0 0.0
  %165 = vmatpush1.msra.mxu0 %v100
  %166 = vmatprep.subr.mxu0 0.0
  %167 = vmatpush2.msra.mxu0 0.0
  %168 = vmatprep.subr.mxu0 0.0
  %169 = vmatpush2.msra.mxu0 0.0
  %170 = vmatprep.subr.mxu0 0.0
  %171 = vmatpush2.msra.mxu0 0.0
  %172 = vmatprep.subr.mxu0 0.0
  %173 = vmatpush2.msra.mxu0 0.0
  %174 = vmatprep.subr.mxu0 0.0
  %175 = vmatpush2.msra.mxu0 0.0
  %176 = vmatprep.subr.mxu0 0.0
  %177 = vmatpush2.msra.mxu0 0.0
  %178 = vmatprep.subr.mxu0 0.0
  %179 = vmatpush2.msra.mxu0 0.0
  %180 = vmatprep.subr.mxu0 0.0
  %181 = vmatpush2.msra.mxu0 0.0
  %182 = vmatprep.subr.mxu0 0.0
  %183 = vmatpush2.msra.mxu0 0.0
  %184 = vmatprep.subr.mxu0 0.0
  %185 = vmatpush2.msra.mxu0 0.0
  %186 = vmatprep.subr.mxu0 0.0
  %187 = vmatpush2.msra.mxu0 0.0
  %188 = vmatprep.subr.mxu0 0.0
  %189 = vmatpush2.msra.mxu0 %v132
  %190 = vmatprep.subr.mxu0 0.0
  %191 = vmatpush2.msra.mxu0 %v119
  %192 = vmatprep.subr.mxu0 0.0
  %193 = vmatpush2.msra.mxu0 %v118
  %194 = vmatprep.subr.mxu0 0.0
  %195 = vmatpush2.msra.mxu0 %v117
  %196 = vmatprep.subr.mxu0 0.0
  %197 = vmatpush2.msra.mxu0 %v116
  %198 = vmatprep.mubr.f32.mxu0 %v122
  %199 = vmatmul.mubr.f32.gmra.mxu0 %v96
  %v200 = vpop.f32.mrf.mxu0
  %v201 = vadd.f32 0.0, %v200
  %v202 = vpop.f32.mrf.mxu0
  %203 = vmatprep.mubr.f32.mxu0 %v124
  %204 = vmatmul.mubr.f32.gmra.mxu0 %v97
  %v205 = vpop.f32.mrf.mxu0
  %v206 = vadd.f32 0.0, %v205
  %v207 = vpop.f32.mrf.mxu0
  %208 = vmatprep.mubr.f32.mxu0 %v126
  %209 = vmatmul.mubr.f32.gmra.mxu0 %v98
  %v210 = vpop.f32.mrf.mxu0
  %v211 = vadd.f32 0.0, %v210
  %v212 = vpop.f32.mrf.mxu0
  %213 = vmatprep.mubr.f32.mxu0 %v128
  %214 = vmatmul.mubr.f32.gmra.mxu0 %v99
  %v215 = vpop.f32.mrf.mxu0
  %v216 = vadd.f32 0.0, %v215
  %v217 = vpop.f32.mrf.mxu0
  %218 = vdwg.mxu0
  %v219 = vld [vmem:[%s2] sm:$0x1]
  %v221 = vlaneseq
  %v222 = vshrl.u32 %v221, 7
  %v223 = vsub.s32 0, %v222
  %v224 = vrot.slane %v219, %v223
  %v226 = vmul.f32 %v201, %v224
  %v227 = vmul.f32 %v206, %v224
  %v228 = vmul.f32 %v211, %v224
  %v229 = vmul.f32 %v216, %v224
  %v230 = vld [vmem:[%s3] sm:$0x1]
  %v232 = vlaneseq
  %v233 = vshrl.u32 %v232, 7
  %v234 = vsub.s32 0, %v233
  %v235 = vrot.slane %v230, %v234
  %v237 = vadd.f32 %v226, %v235
  %v238 = vadd.f32 %v227, %v235
  %v239 = vadd.f32 %v228, %v235
  %v240 = vadd.f32 %v229, %v235
  %v241 = vmax.f32 %v237, 0.0
  %v242 = vmax.f32 %v238, 0.0
  %v243 = vmax.f32 %v239, 0.0
  %v244 = vmax.f32 %v240, 0.0
  %v247 = vrot.slane %v241, 1
  %v248 = vrot.slane %v243, 1
  %v251 = vmax.f32 %v241, %v247
  %v252 = vmax.f32 %v243, %v248
  %v255 = vrot.slane %v242, 1
  %v256 = vrot.slane %v244, 1
  %v259 = vmax.f32 %v241, %v255
  %v260 = vmax.f32 %v243, %v256
  %v261 = vmax.f32 %v242, %v255
  %v262 = vmax.f32 %v244, %v256
  %v265 = vrot.slane %v251, 1
  %v266 = vrot.slane %v252, 1
  %v269 = vrot.slane %v251, 2
  %v270 = vrot.slane %v252, 2
  %v275 = vrot.slane %v259, 3
  %v276 = vrot.slane %v260, 3
  %v281 = vrot.slane %v261, 4
  %v282 = vrot.slane %v262, 4
  %v285 = vrot.slane %v261, 5
  %v286 = vrot.slane %v262, 5
  %v289 = vrot.slane %v261, 6
  %v290 = vrot.slane %v262, 6
  %v293 = vrot.slane %v242, 7
  %v294 = vrot.slane %v244, 7
  %vm297 = vcmask 1040384
  %v298 = vsel %vm297, %v241, %v251
  %v299 = vsel %vm297, %v243, %v252
  %v300 = vsel %vm130, %v298, %v265
  %v301 = vsel %vm130, %v299, %v266
  %vm302 = vcmask 1042432
  %v303 = vsel %vm302, %v300, %v269
  %v304 = vsel %vm302, %v301, %v270
  %vm305 = vcmask 1043456
  %v306 = vsel %vm305, %v303, %v275
  %v307 = vsel %vm305, %v304, %v276
  %vm308 = vcmask 1044480
  %v309 = vsel %vm308, %v306, %v281
  %v310 = vsel %vm308, %v307, %v282
  %v311 = vsel %vm67, %v309, %v285
  %v312 = vsel %vm67, %v310, %v286
  %v313 = vsel %vm44, %v311, %v289
  %v314 = vsel %vm44, %v312, %v290
  %317 = vrot.lane.b32.xlu0 %v313, 120
  %v318 = vpop.permute.xlu0 %317
  %319 = vrot.lane.b32.xlu0 %v293, 120
  %v320 = vpop.permute.xlu0 %319
  %321 = vrot.lane.b32.xlu0 %v314, 120
  %v322 = vpop.permute.xlu0 %321
  %323 = vrot.lane.b32.xlu0 %v294, 120
  %v324 = vpop.permute.xlu0 %323
  %v329 = vmax.f32 %v313, %v318
  %v330 = vmax.f32 %v293, %v320
  %v331 = vmax.f32 %v314, %v322
  %v332 = vmax.f32 %v294, %v324
  %337 = vrot.lane.b32.xlu0 %v329, 120
  %v338 = vpop.permute.xlu0 %337
  %339 = vrot.lane.b32.xlu0 %v330, 120
  %v340 = vpop.permute.xlu0 %339
  %341 = vrot.lane.b32.xlu0 %v331, 120
  %v342 = vpop.permute.xlu0 %341
  %343 = vrot.lane.b32.xlu0 %v332, 120
  %v344 = vpop.permute.xlu0 %343
  %349 = vrot.lane.b32.xlu0 %v329, 112
  %v350 = vpop.permute.xlu0 %349
  %351 = vrot.lane.b32.xlu0 %v330, 112
  %v352 = vpop.permute.xlu0 %351
  %353 = vrot.lane.b32.xlu0 %v331, 112
  %v354 = vpop.permute.xlu0 %353
  %355 = vrot.lane.b32.xlu0 %v332, 112
  %v356 = vpop.permute.xlu0 %355
  %361 = vrot.lane.b32.xlu0 %v329, 104
  %v362 = vpop.permute.xlu0 %361
  %363 = vrot.lane.b32.xlu0 %v330, 104
  %v364 = vpop.permute.xlu0 %363
  %365 = vrot.lane.b32.xlu0 %v331, 104
  %v366 = vpop.permute.xlu0 %365
  %367 = vrot.lane.b32.xlu0 %v332, 104
  %v368 = vpop.permute.xlu0 %367
  %373 = vrot.lane.b32.xlu0 %v329, 96
  %v374 = vpop.permute.xlu0 %373
  %375 = vrot.lane.b32.xlu0 %v330, 96
  %v376 = vpop.permute.xlu0 %375
  %377 = vrot.lane.b32.xlu0 %v331, 96
  %v378 = vpop.permute.xlu0 %377
  %379 = vrot.lane.b32.xlu0 %v332, 96
  %v380 = vpop.permute.xlu0 %379
  %385 = vrot.lane.b32.xlu0 %v329, 88
  %v386 = vpop.permute.xlu0 %385
  %387 = vrot.lane.b32.xlu0 %v330, 88
  %v388 = vpop.permute.xlu0 %387
  %389 = vrot.lane.b32.xlu0 %v331, 88
  %v390 = vpop.permute.xlu0 %389
  %391 = vrot.lane.b32.xlu0 %v332, 88
  %v392 = vpop.permute.xlu0 %391
  %397 = vrot.lane.b32.xlu0 %v329, 80
  %v398 = vpop.permute.xlu0 %397
  %399 = vrot.lane.b32.xlu0 %v330, 80
  %v400 = vpop.permute.xlu0 %399
  %401 = vrot.lane.b32.xlu0 %v331, 80
  %v402 = vpop.permute.xlu0 %401
  %403 = vrot.lane.b32.xlu0 %v332, 80
  %v404 = vpop.permute.xlu0 %403
  %409 = vrot.lane.b32.xlu0 %v313, 72
  %v410 = vpop.permute.xlu0 %409
  %411 = vrot.lane.b32.xlu0 %v293, 72
  %v412 = vpop.permute.xlu0 %411
  %413 = vrot.lane.b32.xlu0 %v314, 72
  %v414 = vpop.permute.xlu0 %413
  %415 = vrot.lane.b32.xlu0 %v294, 72
  %v416 = vpop.permute.xlu0 %415
  %vm421 = vcmask 64512
  %v422 = vsel %vm421, %v313, %v329
  %v423 = vsel %vm421, %v293, %v330
  %v424 = vsel %vm421, %v314, %v331
  %v425 = vsel %vm421, %v294, %v332
  %vm426 = vcmask 130048
  %v427 = vsel %vm426, %v422, %v338
  %v428 = vsel %vm426, %v423, %v340
  %v429 = vsel %vm426, %v424, %v342
  %v430 = vsel %vm426, %v425, %v344
  %vm431 = vcmask 195584
  %v432 = vsel %vm431, %v427, %v350
  %v433 = vsel %vm431, %v428, %v352
  %v434 = vsel %vm431, %v429, %v354
  %v435 = vsel %vm431, %v430, %v356
  %vm436 = vcmask 261120
  %v437 = vsel %vm436, %v432, %v362
  %v438 = vsel %vm436, %v433, %v364
  %v439 = vsel %vm436, %v434, %v366
  %v440 = vsel %vm436, %v435, %v368
  %vm441 = vcmask 326656
  %v442 = vsel %vm441, %v437, %v374
  %v443 = vsel %vm441, %v438, %v376
  %v444 = vsel %vm441, %v439, %v378
  %v445 = vsel %vm441, %v440, %v380
  %vm446 = vcmask 392192
  %v447 = vsel %vm446, %v442, %v386
  %v448 = vsel %vm446, %v443, %v388
  %v449 = vsel %vm446, %v444, %v390
  %v450 = vsel %vm446, %v445, %v392
  %vm451 = vcmask 457728
  %v452 = vsel %vm451, %v447, %v398
  %v453 = vsel %vm451, %v448, %v400
  %v454 = vsel %vm451, %v449, %v402
  %v455 = vsel %vm451, %v450, %v404
  %vm456 = vcmask 523264
  %v457 = vsel %vm456, %v452, %v410
  %v458 = vsel %vm456, %v453, %v412
  %v459 = vsel %vm456, %v454, %v414
  %v460 = vsel %vm456, %v455, %v416
  %465 = vrot.lane.b32.xlu0 %v457, 8
  %v466 = vpop.permute.xlu0 %465
  %467 = vrot.lane.b32.xlu0 %v458, 8
  %v468 = vpop.permute.xlu0 %467
  %469 = vrot.lane.b32.xlu0 %v459, 8
  %v470 = vpop.permute.xlu0 %469
  %471 = vrot.lane.b32.xlu0 %v460, 8
  %v472 = vpop.permute.xlu0 %471
  %v477 = vsel %vm421, 0.0, %v466
  %v478 = vsel %vm421, 0.0, %v468
  %v479 = vsel %vm421, 0.0, %v470
  %v480 = vsel %vm421, 0.0, %v472
  %vm481 = vcmask 654336
  %v482 = vsel %vm481, %v477, 0.0
  %v483 = vsel %vm481, %v478, 0.0
  %v484 = vsel %vm481, %v479, 0.0
  %v485 = vsel %vm481, %v480, 0.0
  %v490 = vrot.slane %v482, 7
  %v491 = vrot.slane %v483, 7
  %v492 = vsel %vm297, %v490, %v491
  %v493 = vrot.slane %v484, 7
  %v494 = vrot.slane %v485, 7
  %v495 = vsel %vm297, %v493, %v494
  %v500 = vsel %vm297, 0.0, %v490
  %v501 = vsel %vm297, 0.0, %v493
  %v502 = vsel %vm130, %v492, 0.0
  %v503 = vsel %vm130, %v495, 0.0
  %v508 = vrot.slane %v500, 1
  %v509 = vrot.slane %v502, 1
  %v510 = vsel %vm44, %v508, %v509
  %v511 = vrot.slane %v501, 1
  %v512 = vrot.slane %v503, 1
  %v513 = vsel %vm44, %v511, %v512
  %514 = vrot.lane.b32.xlu0 %v510, 88
  %v515 = vpop.permute.xlu0 %514
  %516 = vrot.lane.b32.xlu0 %v509, 88
  %v517 = vpop.permute.xlu0 %516
  %518 = vrot.lane.b32.xlu0 %v513, 88
  %v519 = vpop.permute.xlu0 %518
  %520 = vrot.lane.b32.xlu0 %v512, 88
  %v521 = vpop.permute.xlu0 %520
  %v526 = vrot.slane %v500, 2
  %v527 = vrot.slane %v502, 2
  %v528 = vsel %vm67, %v526, %v527
  %v529 = vrot.slane %v501, 2
  %v530 = vrot.slane %v503, 2
  %v531 = vsel %vm67, %v529, %v530
  %532 = vrot.lane.b32.xlu0 %v528, 48
  %v533 = vpop.permute.xlu0 %532
  %534 = vrot.lane.b32.xlu0 %v527, 48
  %v535 = vpop.permute.xlu0 %534
  %536 = vrot.lane.b32.xlu0 %v531, 48
  %v537 = vpop.permute.xlu0 %536
  %538 = vrot.lane.b32.xlu0 %v530, 48
  %v539 = vpop.permute.xlu0 %538
  %vm544 = vcmask 719872
  %v545 = vsel %vm544, %v500, %v515
  %v546 = vsel %vm544, %v502, %v517
  %v547 = vsel %vm544, %v501, %v519
  %v548 = vsel %vm544, %v503, %v521
  %v549 = vsel %vm446, %v515, %v533
  %v550 = vsel %vm446, %v517, %v535
  %v551 = vsel %vm446, %v519, %v537
  %v552 = vsel %vm446, %v521, %v539
  %v561 = vcombine.low %v545, %v549
  %v562 = vcombine.high %v545, %v549
  %v563 = vcombine.high %v533, %v533
  %v565 = vunpack.c.l.s4 1966171168
  %v566 = vunpack.c.0.s8 %v565
  %v567 = vlaneseq
  %v568 = vshrl.u32 %v567, 7
  %v569 = vsub.s32 %v566, %v568
  %v570 = vrot.slane %v561, %v569
  %v572 = vunpack.c.l.s4 1966171168
  %v573 = vunpack.c.0.s8 %v572
  %v574 = vlaneseq
  %v575 = vshrl.u32 %v574, 7
  %v576 = vsub.s32 %v573, %v575
  %v577 = vrot.slane %v562, %v576
  %v579 = vunpack.c.l.s4 1966171168
  %v580 = vunpack.c.0.s8 %v579
  %v581 = vlaneseq
  %v582 = vshrl.u32 %v581, 7
  %v583 = vsub.s32 %v580, %v582
  %v584 = vrot.slane %v533, %v583
  %v586 = vunpack.c.l.s4 1966171168
  %v587 = vunpack.c.0.s8 %v586
  %v588 = vlaneseq
  %v589 = vshrl.u32 %v588, 7
  %v590 = vsub.s32 %v587, %v589
  %v591 = vrot.slane %v563, %v590
  %v592 = vcombine.low %v570, %v584
  %v593 = vcombine.high %v570, %v584
  %v594 = vcombine.low %v577, %v591
  %v595 = vcombine.high %v577, %v591
  %v597 = vunpack.c.l.s4 1966171168
  %v598 = vunpack.c.0.s8 %v597
  %v599 = vlaneseq
  %v600 = vshrl.u32 %v599, 7
  %v601 = vsub.s32 %v598, %v600
  %v602 = vrot.slane %v592, %v601
  %v604 = vunpack.c.l.s4 1966171168
  %v605 = vunpack.c.0.s8 %v604
  %v606 = vlaneseq
  %v607 = vshrl.u32 %v606, 7
  %v608 = vsub.s32 %v605, %v607
  %v609 = vrot.slane %v594, %v608
  %v611 = vunpack.c.l.s4 1966171168
  %v612 = vunpack.c.0.s8 %v611
  %v613 = vlaneseq
  %v614 = vshrl.u32 %v613, 7
  %v615 = vsub.s32 %v612, %v614
  %v616 = vrot.slane %v593, %v615
  %v618 = vunpack.c.l.s4 1966171168
  %v619 = vunpack.c.0.s8 %v618
  %v620 = vlaneseq
  %v621 = vshrl.u32 %v620, 7
  %v622 = vsub.s32 %v619, %v621
  %v623 = vrot.slane %v595, %v622
  %v624 = vcombine.high %v602, %v602
  %v625 = vcombine.high %v609, %v609
  %v626 = vcombine.high %v616, %v616
  %v627 = vcombine.high %v623, %v623
  %v628 = vcombine.low %v546, %v550
  %v630 = vunpack.c.l.s4 1966171168
  %v631 = vunpack.c.0.s8 %v630
  %v632 = vlaneseq
  %v633 = vshrl.u32 %v632, 7
  %v634 = vsub.s32 %v631, %v633
  %v635 = vrot.slane %v628, %v634
  %v637 = vunpack.c.l.s4 1966171168
  %v638 = vunpack.c.0.s8 %v637
  %v639 = vlaneseq
  %v640 = vshrl.u32 %v639, 7
  %v641 = vsub.s32 %v638, %v640
  %v642 = vrot.slane %v535, %v641
  %v643 = vcombine.low %v635, %v642
  %v645 = vunpack.c.l.s4 1966171168
  %v646 = vunpack.c.0.s8 %v645
  %v647 = vlaneseq
  %v648 = vshrl.u32 %v647, 7
  %v649 = vsub.s32 %v646, %v648
  %v650 = vrot.slane %v643, %v649
  %v651 = vcombine.low %v547, %v551
  %v652 = vcombine.high %v547, %v551
  %v653 = vcombine.high %v537, %v537
  %v655 = vunpack.c.l.s4 1966171168
  %v656 = vunpack.c.0.s8 %v655
  %v657 = vlaneseq
  %v658 = vshrl.u32 %v657, 7
  %v659 = vsub.s32 %v656, %v658
  %v660 = vrot.slane %v651, %v659
  %v662 = vunpack.c.l.s4 1966171168
  %v663 = vunpack.c.0.s8 %v662
  %v664 = vlaneseq
  %v665 = vshrl.u32 %v664, 7
  %v666 = vsub.s32 %v663, %v665
  %v667 = vrot.slane %v652, %v666
  %v669 = vunpack.c.l.s4 1966171168
  %v670 = vunpack.c.0.s8 %v669
  %v671 = vlaneseq
  %v672 = vshrl.u32 %v671, 7
  %v673 = vsub.s32 %v670, %v672
  %v674 = vrot.slane %v537, %v673
  %v676 = vunpack.c.l.s4 1966171168
  %v677 = vunpack.c.0.s8 %v676
  %v678 = vlaneseq
  %v679 = vshrl.u32 %v678, 7
  %v680 = vsub.s32 %v677, %v679
  %v681 = vrot.slane %v653, %v680
  %v682 = vcombine.low %v660, %v674
  %v683 = vcombine.high %v660, %v674
  %v684 = vcombine.low %v667, %v681
  %v685 = vcombine.high %v667, %v681
  %v687 = vunpack.c.l.s4 1966171168
  %v688 = vunpack.c.0.s8 %v687
  %v689 = vlaneseq
  %v690 = vshrl.u32 %v689, 7
  %v691 = vsub.s32 %v688, %v690
  %v692 = vrot.slane %v682, %v691
  %v694 = vunpack.c.l.s4 1966171168
  %v695 = vunpack.c.0.s8 %v694
  %v696 = vlaneseq
  %v697 = vshrl.u32 %v696, 7
  %v698 = vsub.s32 %v695, %v697
  %v699 = vrot.slane %v684, %v698
  %v701 = vunpack.c.l.s4 1966171168
  %v702 = vunpack.c.0.s8 %v701
  %v703 = vlaneseq
  %v704 = vshrl.u32 %v703, 7
  %v705 = vsub.s32 %v702, %v704
  %v706 = vrot.slane %v683, %v705
  %v708 = vunpack.c.l.s4 1966171168
  %v709 = vunpack.c.0.s8 %v708
  %v710 = vlaneseq
  %v711 = vshrl.u32 %v710, 7
  %v712 = vsub.s32 %v709, %v711
  %v713 = vrot.slane %v685, %v712
  %v714 = vcombine.high %v692, %v692
  %v715 = vcombine.high %v699, %v699
  %v716 = vcombine.high %v706, %v706
  %v717 = vcombine.high %v713, %v713
  %v718 = vcombine.low %v548, %v552
  %v720 = vunpack.c.l.s4 1966171168
  %v721 = vunpack.c.0.s8 %v720
  %v722 = vlaneseq
  %v723 = vshrl.u32 %v722, 7
  %v724 = vsub.s32 %v721, %v723
  %v725 = vrot.slane %v718, %v724
  %v727 = vunpack.c.l.s4 1966171168
  %v728 = vunpack.c.0.s8 %v727
  %v729 = vlaneseq
  %v730 = vshrl.u32 %v729, 7
  %v731 = vsub.s32 %v728, %v730
  %v732 = vrot.slane %v539, %v731
  %v733 = vcombine.low %v725, %v732
  %v735 = vunpack.c.l.s4 1966171168
  %v736 = vunpack.c.0.s8 %v735
  %v737 = vlaneseq
  %v738 = vshrl.u32 %v737, 7
  %v739 = vsub.s32 %v736, %v738
  %v740 = vrot.slane %v733, %v739
  %v741 = vld [vmem:[%s4] sm:$0xff]
  %v742 = vld [vmem:[%s4 + $0x8] sm:$0xff]
  %v743 = vld [vmem:[%s4 + $0x10] sm:$0xff]
  %v744 = vld [vmem:[%s4 + $0x18] sm:$0xff]
  %v745 = vld [vmem:[%s4 + $0x20] sm:$0xff]
  %v746 = vld [vmem:[%s4 + $0x28] sm:$0xff]
  %v747 = vld [vmem:[%s4 + $0x30] sm:$0xff]
  %v748 = vld [vmem:[%s4 + $0x38] sm:$0xff]
  %v749 = vld [vmem:[%s4 + $0x40] sm:$0xff]
  %v750 = vld [vmem:[%s4 + $0x48] sm:$0xff]
  %v751 = vld [vmem:[%s4 + $0x50] sm:$0xff]
  %v752 = vld [vmem:[%s4 + $0x58] sm:$0xff]
  %v753 = vld [vmem:[%s4 + $0x60] sm:$0xff]
  %v754 = vld [vmem:[%s4 + $0x68] sm:$0xff]
  %v755 = vld [vmem:[%s4 + $0x70] sm:$0xff]
  %v756 = vld [vmem:[%s4 + $0x78] sm:$0xff]
  %v757 = vld [vmem:[%s4 + $0x80] sm:$0xff]
  %v758 = vld [vmem:[%s4 + $0x88] sm:$0xff]
  %v759 = vld [vmem:[%s4 + $0x90] sm:$0xff]
  %v760 = vld [vmem:[%s4 + $0x98] sm:$0xff]
  %v761 = vld [vmem:[%s4 + $0xa0] sm:$0xff]
  %v762 = vld [vmem:[%s4 + $0xa8] sm:$0xff]
  %v763 = vld [vmem:[%s4 + $0xb0] sm:$0xff]
  %v764 = vld [vmem:[%s4 + $0xb8] sm:$0xff]
  %v765 = vld [vmem:[%s4 + $0xc0] sm:$0xff]
  %v766 = vld [vmem:[%s4 + $0xc8] sm:$0xff]
  %v767 = vld [vmem:[%s4 + $0xd0] sm:$0xff]
  %v768 = vld [vmem:[%s4 + $0xd8] sm:$0xff]
  %v769 = vld [vmem:[%s4 + $0xe0] sm:$0xff]
  %v770 = vld [vmem:[%s4 + $0xe8] sm:$0xff]
  %v771 = vld [vmem:[%s4 + $0xf0] sm:$0xff]
  %v772 = vld [vmem:[%s4 + $0xf8] sm:$0xff]
  %v773 = vld [vmem:[%s4 + $0x100] sm:$0xff]
  %v774 = vld [vmem:[%s4 + $0x108] sm:$0xff]
  %v775 = vld [vmem:[%s4 + $0x110] sm:$0xff]
  %v776 = vld [vmem:[%s4 + $0x118] sm:$0xff]
  %v777 = vld [vmem:[%s4 + $0x120] sm:$0xff]
  %v778 = vld [vmem:[%s4 + $0x128] sm:$0xff]
  %v779 = vld [vmem:[%s4 + $0x130] sm:$0xff]
  %v780 = vld [vmem:[%s4 + $0x138] sm:$0xff]
  %v781 = vld [vmem:[%s4 + $0x140] sm:$0xff]
  %v782 = vld [vmem:[%s4 + $0x148] sm:$0xff]
  %v783 = vld [vmem:[%s4 + $0x150] sm:$0xff]
  %v784 = vld [vmem:[%s4 + $0x158] sm:$0xff]
  %v785 = vld [vmem:[%s4 + $0x160] sm:$0xff]
  %v786 = vld [vmem:[%s4 + $0x168] sm:$0xff]
  %v787 = vld [vmem:[%s4 + $0x170] sm:$0xff]
  %v788 = vld [vmem:[%s4 + $0x178] sm:$0xff]
  %v789 = vld [vmem:[%s4 + $0x180] sm:$0xff]
  %v790 = vld [vmem:[%s4 + $0x188] sm:$0xff]
  %v791 = vld [vmem:[%s4 + $0x190] sm:$0xff]
  %v792 = vld [vmem:[%s4 + $0x198] sm:$0xff]
  %v793 = vld [vmem:[%s4 + $0x1a0] sm:$0xff]
  %v794 = vld [vmem:[%s4 + $0x1a8] sm:$0xff]
  %v795 = vld [vmem:[%s4 + $0x1b0] sm:$0xff]
  %v796 = vld [vmem:[%s4 + $0x1b8] sm:$0xff]
  %v797 = vld [vmem:[%s4 + $0x1c0] sm:$0xff]
  %v798 = vld [vmem:[%s4 + $0x1c8] sm:$0xff]
  %v799 = vld [vmem:[%s4 + $0x1d0] sm:$0xff]
  %v800 = vld [vmem:[%s4 + $0x1d8] sm:$0xff]
  %v801 = vld [vmem:[%s4 + $0x1e0] sm:$0xff]
  %v802 = vld [vmem:[%s4 + $0x1e8] sm:$0xff]
  %v803 = vld [vmem:[%s4 + $0x1f0] sm:$0xff]
  %v804 = vld [vmem:[%s4 + $0x1f8] sm:$0xff]
  %v805 = vld [vmem:[%s4 + $0x200] sm:$0xff]
  %v806 = vld [vmem:[%s4 + $0x208] sm:$0xff]
  %v807 = vcombine.low %v602, %v616
  %v808 = vcombine.low %v624, %v626
  %v809 = vcombine.low %v609, %v623
  %v810 = vcombine.low %v625, %v627
  %v812 = vunpack.c.l.s4 1966171168
  %v813 = vunpack.c.0.s8 %v812
  %v814 = vlaneseq
  %v815 = vshrl.u32 %v814, 7
  %v816 = vsub.s32 %v813, %v815
  %v817 = vrot.slane %v807, %v816
  %v819 = vunpack.c.l.s4 1966171168
  %v820 = vunpack.c.0.s8 %v819
  %v821 = vlaneseq
  %v822 = vshrl.u32 %v821, 7
  %v823 = vsub.s32 %v820, %v822
  %v824 = vrot.slane %v808, %v823
  %v826 = vunpack.c.l.s4 1966171168
  %v827 = vunpack.c.0.s8 %v826
  %v828 = vlaneseq
  %v829 = vshrl.u32 %v828, 7
  %v830 = vsub.s32 %v827, %v829
  %v831 = vrot.slane %v809, %v830
  %v833 = vunpack.c.l.s4 1966171168
  %v834 = vunpack.c.0.s8 %v833
  %v835 = vlaneseq
  %v836 = vshrl.u32 %v835, 7
  %v837 = vsub.s32 %v834, %v836
  %v838 = vrot.slane %v810, %v837
  %v839 = vcombine.low %v817, %v824
  %v840 = vcombine.high %v817, %v824
  %v841 = vcombine.low %v831, %v838
  %v842 = vcombine.high %v831, %v838
  %v844 = vunpack.c.l.s4 1966171168
  %v845 = vunpack.c.0.s8 %v844
  %v846 = vlaneseq
  %v847 = vshrl.u32 %v846, 7
  %v848 = vsub.s32 %v845, %v847
  %v849 = vrot.slane %v839, %v848
  %v851 = vunpack.c.l.s4 1966171168
  %v852 = vunpack.c.0.s8 %v851
  %v853 = vlaneseq
  %v854 = vshrl.u32 %v853, 7
  %v855 = vsub.s32 %v852, %v854
  %v856 = vrot.slane %v840, %v855
  %v858 = vunpack.c.l.s4 1966171168
  %v859 = vunpack.c.0.s8 %v858
  %v860 = vlaneseq
  %v861 = vshrl.u32 %v860, 7
  %v862 = vsub.s32 %v859, %v861
  %v863 = vrot.slane %v841, %v862
  %v865 = vunpack.c.l.s4 1966171168
  %v866 = vunpack.c.0.s8 %v865
  %v867 = vlaneseq
  %v868 = vshrl.u32 %v867, 7
  %v869 = vsub.s32 %v866, %v868
  %v870 = vrot.slane %v842, %v869
  %v871 = vcombine.low %v849, %v863
  %v872 = vcombine.high %v849, %v863
  %v873 = vcombine.low %v856, %v870
  %v874 = vcombine.low %v650, %v692
  %v875 = vcombine.low %v706, %v714
  %v876 = vcombine.low %v716, %v699
  %v877 = vcombine.low %v713, %v715
  %v879 = vunpack.c.l.s4 1966171168
  %v880 = vunpack.c.0.s8 %v879
  %v881 = vlaneseq
  %v882 = vshrl.u32 %v881, 7
  %v883 = vsub.s32 %v880, %v882
  %v884 = vrot.slane %v874, %v883
  %v886 = vunpack.c.l.s4 1966171168
  %v887 = vunpack.c.0.s8 %v886
  %v888 = vlaneseq
  %v889 = vshrl.u32 %v888, 7
  %v890 = vsub.s32 %v887, %v889
  %v891 = vrot.slane %v875, %v890
  %v893 = vunpack.c.l.s4 1966171168
  %v894 = vunpack.c.0.s8 %v893
  %v895 = vlaneseq
  %v896 = vshrl.u32 %v895, 7
  %v897 = vsub.s32 %v894, %v896
  %v898 = vrot.slane %v876, %v897
  %v900 = vunpack.c.l.s4 1966171168
  %v901 = vunpack.c.0.s8 %v900
  %v902 = vlaneseq
  %v903 = vshrl.u32 %v902, 7
  %v904 = vsub.s32 %v901, %v903
  %v905 = vrot.slane %v877, %v904
  %v906 = vcombine.low %v884, %v891
  %v907 = vcombine.high %v884, %v891
  %v908 = vcombine.low %v898, %v905
  %v909 = vcombine.high %v898, %v905
  %v911 = vunpack.c.l.s4 1966171168
  %v912 = vunpack.c.0.s8 %v911
  %v913 = vlaneseq
  %v914 = vshrl.u32 %v913, 7
  %v915 = vsub.s32 %v912, %v914
  %v916 = vrot.slane %v906, %v915
  %v918 = vunpack.c.l.s4 1966171168
  %v919 = vunpack.c.0.s8 %v918
  %v920 = vlaneseq
  %v921 = vshrl.u32 %v920, 7
  %v922 = vsub.s32 %v919, %v921
  %v923 = vrot.slane %v907, %v922
  %v925 = vunpack.c.l.s4 1966171168
  %v926 = vunpack.c.0.s8 %v925
  %v927 = vlaneseq
  %v928 = vshrl.u32 %v927, 7
  %v929 = vsub.s32 %v926, %v928
  %v930 = vrot.slane %v908, %v929
  %v932 = vunpack.c.l.s4 1966171168
  %v933 = vunpack.c.0.s8 %v932
  %v934 = vlaneseq
  %v935 = vshrl.u32 %v934, 7
  %v936 = vsub.s32 %v933, %v935
  %v937 = vrot.slane %v909, %v936
  %v938 = vcombine.low %v916, %v930
  %v939 = vcombine.high %v916, %v930
  %v940 = vcombine.low %v923, %v937
  %v941 = vcombine.low %v717, %v740
  %v943 = vunpack.c.l.s4 1966171168
  %v944 = vunpack.c.0.s8 %v943
  %v945 = vlaneseq
  %v946 = vshrl.u32 %v945, 7
  %v947 = vsub.s32 %v944, %v946
  %v948 = vrot.slane %v941, %v947
  %v949 = vcombine.high %v948, %v948
  %v951 = vunpack.c.l.s4 1966171168
  %v952 = vunpack.c.0.s8 %v951
  %v953 = vlaneseq
  %v954 = vshrl.u32 %v953, 7
  %v955 = vsub.s32 %v952, %v954
  %v956 = vrot.slane %v948, %v955
  %v958 = vunpack.c.l.s4 1966171168
  %v959 = vunpack.c.0.s8 %v958
  %v960 = vlaneseq
  %v961 = vshrl.u32 %v960, 7
  %v962 = vsub.s32 %v959, %v961
  %v963 = vrot.slane %v949, %v962
  %v964 = vcombine.high %v956, %v956
  %v971 = vsel %vm421, %v872, 0
  %v973 = vsel %vm421, %v939, 0
  %v975 = vsel %vm421, %v964, 0
  %977 = vmatprep.subr.mxu0 %v772
  %978 = vmatpush1.msra.mxu0 %v771
  %979 = vmatprep.subr.mxu0 %v770
  %980 = vmatpush1.msra.mxu0 %v769
  %981 = vmatprep.subr.mxu0 %v768
  %982 = vmatpush1.msra.mxu0 %v767
  %983 = vmatprep.subr.mxu0 %v766
  %984 = vmatpush1.msra.mxu0 %v765
  %985 = vmatprep.subr.mxu0 %v764
  %986 = vmatpush1.msra.mxu0 %v763
  %987 = vmatprep.subr.mxu0 %v762
  %988 = vmatpush1.msra.mxu0 %v761
  %989 = vmatprep.subr.mxu0 %v760
  %990 = vmatpush1.msra.mxu0 %v759
  %991 = vmatprep.subr.mxu0 %v758
  %992 = vmatpush1.msra.mxu0 %v757
  %993 = vmatprep.subr.mxu0 %v756
  %994 = vmatpush1.msra.mxu0 %v755
  %995 = vmatprep.subr.mxu0 %v754
  %996 = vmatpush1.msra.mxu0 %v753
  %997 = vmatprep.subr.mxu0 %v752
  %998 = vmatpush1.msra.mxu0 %v751
  %999 = vmatprep.subr.mxu0 %v750
  %1000 = vmatpush1.msra.mxu0 %v749
  %1001 = vmatprep.subr.mxu0 %v748
  %1002 = vmatpush1.msra.mxu0 %v747
  %1003 = vmatprep.subr.mxu0 %v746
  %1004 = vmatpush1.msra.mxu0 %v745
  %1005 = vmatprep.subr.mxu0 %v744
  %1006 = vmatpush1.msra.mxu0 %v743
  %1007 = vmatprep.subr.mxu0 %v742
  %1008 = vmatpush1.msra.mxu0 %v741
  %1009 = vmatprep.subr.mxu0 %v804
  %1010 = vmatpush2.msra.mxu0 %v803
  %1011 = vmatprep.subr.mxu0 %v802
  %1012 = vmatpush2.msra.mxu0 %v801
  %1013 = vmatprep.subr.mxu0 %v800
  %1014 = vmatpush2.msra.mxu0 %v799
  %1015 = vmatprep.subr.mxu0 %v798
  %1016 = vmatpush2.msra.mxu0 %v797
  %1017 = vmatprep.subr.mxu0 %v796
  %1018 = vmatpush2.msra.mxu0 %v795
  %1019 = vmatprep.subr.mxu0 %v794
  %1020 = vmatpush2.msra.mxu0 %v793
  %1021 = vmatprep.subr.mxu0 %v792
  %1022 = vmatpush2.msra.mxu0 %v791
  %1023 = vmatprep.subr.mxu0 %v790
  %1024 = vmatpush2.msra.mxu0 %v789
  %1025 = vmatprep.subr.mxu0 %v788
  %1026 = vmatpush2.msra.mxu0 %v787
  %1027 = vmatprep.subr.mxu0 %v786
  %1028 = vmatpush2.msra.mxu0 %v785
  %1029 = vmatprep.subr.mxu0 %v784
  %1030 = vmatpush2.msra.mxu0 %v783
  %1031 = vmatprep.subr.mxu0 %v782
  %1032 = vmatpush2.msra.mxu0 %v781
  %1033 = vmatprep.subr.mxu0 %v780
  %1034 = vmatpush2.msra.mxu0 %v779
  %1035 = vmatprep.subr.mxu0 %v778
  %1036 = vmatpush2.msra.mxu0 %v777
  %1037 = vmatprep.subr.mxu0 %v776
  %1038 = vmatpush2.msra.mxu0 %v775
  %1039 = vmatprep.subr.mxu0 %v774
  %1040 = vmatpush2.msra.mxu0 %v773
  %1041 = vmatprep.mubr.f32.mxu0 %v873
  %1042 = vmatmul.mubr.f32.gmra.mxu0 %v871
  %v1043 = vpop.f32.mrf.mxu0
  %v1044 = vadd.f32 0.0, %v1043
  %v1045 = vpop.f32.mrf.mxu0
  %v1046 = vadd.f32 0.0, %v1045
  %1047 = vmatprep.mubr.f32.mxu0 %v940
  %1048 = vmatmul.mubr.f32.gmra.mxu0 %v938
  %v1049 = vpop.f32.mrf.mxu0
  %v1050 = vadd.f32 0.0, %v1049
  %v1051 = vpop.f32.mrf.mxu0
  %v1052 = vadd.f32 0.0, %v1051
  %1053 = vmatprep.mubr.f32.mxu0 %v963
  %1054 = vmatmul.mubr.f32.gmra.mxu0 %v956
  %v1055 = vpop.f32.mrf.mxu0
  %v1056 = vadd.f32 0.0, %v1055
  %v1057 = vpop.f32.mrf.mxu0
  %v1058 = vadd.f32 0.0, %v1057
  %1059 = vdwg.mxu0
  %1060 = vmatprep.subr.mxu0 0.0
  %1061 = vmatpush1.msra.mxu0 0.0
  %1062 = vmatprep.subr.mxu0 0.0
  %1063 = vmatpush1.msra.mxu0 0.0
  %1064 = vmatprep.subr.mxu0 0.0
  %1065 = vmatpush1.msra.mxu0 0.0
  %1066 = vmatprep.subr.mxu0 0.0
  %1067 = vmatpush1.msra.mxu0 0.0
  %1068 = vmatprep.subr.mxu0 0.0
  %1069 = vmatpush1.msra.mxu0 0.0
  %1070 = vmatprep.subr.mxu0 0.0
  %1071 = vmatpush1.msra.mxu0 0.0
  %1072 = vmatprep.subr.mxu0 0.0
  %1073 = vmatpush1.msra.mxu0 0.0
  %1074 = vmatprep.subr.mxu0 0.0
  %1075 = vmatpush1.msra.mxu0 0.0
  %1076 = vmatprep.subr.mxu0 0.0
  %1077 = vmatpush1.msra.mxu0 0.0
  %1078 = vmatprep.subr.mxu0 0.0
  %1079 = vmatpush1.msra.mxu0 0.0
  %1080 = vmatprep.subr.mxu0 0.0
  %1081 = vmatpush1.msra.mxu0 0.0
  %1082 = vmatprep.subr.mxu0 0.0
  %1083 = vmatpush1.msra.mxu0 0.0
  %1084 = vmatprep.subr.mxu0 0.0
  %1085 = vmatpush1.msra.mxu0 0.0
  %1086 = vmatprep.subr.mxu0 0.0
  %1087 = vmatpush1.msra.mxu0 0.0
  %1088 = vmatprep.subr.mxu0 0.0
  %1089 = vmatpush1.msra.mxu0 0.0
  %1090 = vmatprep.subr.mxu0 %v806
  %1091 = vmatpush1.msra.mxu0 %v805
  %1092 = vmatprep.subr.mxu0 0.0
  %1093 = vmatpush2.msra.mxu0 0.0
  %1094 = vmatprep.subr.mxu0 0.0
  %1095 = vmatpush2.msra.mxu0 0.0
  %1096 = vmatprep.subr.mxu0 0.0
  %1097 = vmatpush2.msra.mxu0 0.0
  %1098 = vmatprep.subr.mxu0 0.0
  %1099 = vmatpush2.msra.mxu0 0.0
  %1100 = vmatprep.subr.mxu0 0.0
  %1101 = vmatpush2.msra.mxu0 0.0
  %1102 = vmatprep.subr.mxu0 0.0
  %1103 = vmatpush2.msra.mxu0 0.0
  %1104 = vmatprep.subr.mxu0 0.0
  %1105 = vmatpush2.msra.mxu0 0.0
  %1106 = vmatprep.subr.mxu0 0.0
  %1107 = vmatpush2.msra.mxu0 0.0
  %1108 = vmatprep.subr.mxu0 0.0
  %1109 = vmatpush2.msra.mxu0 0.0
  %1110 = vmatprep.subr.mxu0 0.0
  %1111 = vmatpush2.msra.mxu0 0.0
  %1112 = vmatprep.subr.mxu0 0.0
  %1113 = vmatpush2.msra.mxu0 0.0
  %1114 = vmatprep.subr.mxu0 0.0
  %1115 = vmatpush2.msra.mxu0 0.0
  %1116 = vmatprep.subr.mxu0 0.0
  %1117 = vmatpush2.msra.mxu0 0.0
  %1118 = vmatprep.subr.mxu0 0.0
  %1119 = vmatpush2.msra.mxu0 0.0
  %1120 = vmatprep.subr.mxu0 0.0
  %1121 = vmatpush2.msra.mxu0 0.0
  %1122 = vmatprep.subr.mxu0 0.0
  %1123 = vmatpush2.msra.mxu0 0.0
  %1124 = vmatprep.mubr.f32.mxu0 0.0
  %1125 = vmatmul.mubr.f32.gmra.mxu0 %v971
  %v1126 = vpop.f32.mrf.mxu0
  %v1127 = vadd.f32 %v1044, %v1126
  %v1128 = vpop.f32.mrf.mxu0
  %v1129 = vadd.f32 %v1046, %v1128
  %1130 = vmatprep.mubr.f32.mxu0 0.0
  %1131 = vmatmul.mubr.f32.gmra.mxu0 %v973
  %v1132 = vpop.f32.mrf.mxu0
  %v1133 = vadd.f32 %v1050, %v1132
  %v1134 = vpop.f32.mrf.mxu0
  %v1135 = vadd.f32 %v1052, %v1134
  %1136 = vmatprep.mubr.f32.mxu0 0.0
  %1137 = vmatmul.mubr.f32.gmra.mxu0 %v975
  %v1138 = vpop.f32.mrf.mxu0
  %v1139 = vadd.f32 %v1056, %v1138
  %v1140 = vpop.f32.mrf.mxu0
  %v1141 = vadd.f32 %v1058, %v1140
  %1142 = vdwg.mxu0
  %v1143 = vld [vmem:[%s5] sm:$0x3]
  %v1145 = vlaneseq
  %v1146 = vshrl.u32 %v1145, 7
  %v1147 = vsub.s32 0, %v1146
  %v1148 = vrot.slane %v1143, %v1147
  %v1149 = vlaneseq
  %v1150 = vshrl.u32 %v1149, 7
  %v1151 = vsub.s32 1, %v1150
  %v1152 = vrot.slane %v1143, %v1151
  %v1155 = vmul.f32 %v1127, %v1148
  %v1156 = vmul.f32 %v1129, %v1152
  %v1157 = vmul.f32 %v1133, %v1148
  %v1158 = vmul.f32 %v1135, %v1152
  %v1159 = vmul.f32 %v1139, %v1148
  %v1160 = vmul.f32 %v1141, %v1152
  %v1161 = vld [vmem:[%s6] sm:$0x3]
  %v1163 = vlaneseq
  %v1164 = vshrl.u32 %v1163, 7
  %v1165 = vsub.s32 0, %v1164
  %v1166 = vrot.slane %v1161, %v1165
  %v1167 = vlaneseq
  %v1168 = vshrl.u32 %v1167, 7
  %v1169 = vsub.s32 1, %v1168
  %v1170 = vrot.slane %v1161, %v1169
  %v1173 = vadd.f32 %v1155, %v1166
  %v1174 = vadd.f32 %v1156, %v1170
  %v1175 = vadd.f32 %v1157, %v1166
  %v1176 = vadd.f32 %v1158, %v1170
  %v1177 = vadd.f32 %v1159, %v1166
  %v1178 = vadd.f32 %v1160, %v1170
  %v1179 = vmax.f32 %v1173, 0.0
  %v1180 = vmax.f32 %v1174, 0.0
  %v1181 = vmax.f32 %v1175, 0.0
  %v1182 = vmax.f32 %v1176, 0.0
  %v1183 = vmax.f32 %v1177, 0.0
  %v1184 = vmax.f32 %v1178, 0.0
  %v1191 = vcombine.low %v1179, %v1180
  %v1192 = vcombine.high %v1179, %v1180
  %v1194 = vunpack.c.l.s4 1966171168
  %v1195 = vunpack.c.0.s8 %v1194
  %v1196 = vlaneseq
  %v1197 = vshrl.u32 %v1196, 7
  %v1198 = vsub.s32 %v1195, %v1197
  %v1199 = vrot.slane %v1191, %v1198
  %v1201 = vunpack.c.l.s4 1966171168
  %v1202 = vunpack.c.0.s8 %v1201
  %v1203 = vlaneseq
  %v1204 = vshrl.u32 %v1203, 7
  %v1205 = vsub.s32 %v1202, %v1204
  %v1206 = vrot.slane %v1192, %v1205
  %v1207 = vcombine.high %v1199, %v1199
  %v1208 = vcombine.high %v1206, %v1206
  %v1210 = vunpack.c.l.s4 1966171168
  %v1211 = vunpack.c.0.s8 %v1210
  %v1212 = vlaneseq
  %v1213 = vshrl.u32 %v1212, 7
  %v1214 = vsub.s32 %v1211, %v1213
  %v1215 = vrot.slane %v1199, %v1214
  %v1217 = vunpack.c.l.s4 1966171168
  %v1218 = vunpack.c.0.s8 %v1217
  %v1219 = vlaneseq
  %v1220 = vshrl.u32 %v1219, 7
  %v1221 = vsub.s32 %v1218, %v1220
  %v1222 = vrot.slane %v1206, %v1221
  %v1224 = vunpack.c.l.s4 1966171168
  %v1225 = vunpack.c.0.s8 %v1224
  %v1226 = vlaneseq
  %v1227 = vshrl.u32 %v1226, 7
  %v1228 = vsub.s32 %v1225, %v1227
  %v1229 = vrot.slane %v1207, %v1228
  %v1231 = vunpack.c.l.s4 1966171168
  %v1232 = vunpack.c.0.s8 %v1231
  %v1233 = vlaneseq
  %v1234 = vshrl.u32 %v1233, 7
  %v1235 = vsub.s32 %v1232, %v1234
  %v1236 = vrot.slane %v1208, %v1235
  %v1237 = vcombine.high %v1215, %v1215
  %v1238 = vcombine.high %v1222, %v1222
  %v1239 = vcombine.high %v1229, %v1229
  %v1240 = vcombine.high %v1236, %v1236
  %v1241 = vcombine.low %v1181, %v1182
  %v1242 = vcombine.high %v1181, %v1182
  %v1244 = vunpack.c.l.s4 1966171168
  %v1245 = vunpack.c.0.s8 %v1244
  %v1246 = vlaneseq
  %v1247 = vshrl.u32 %v1246, 7
  %v1248 = vsub.s32 %v1245, %v1247
  %v1249 = vrot.slane %v1241, %v1248
  %v1251 = vunpack.c.l.s4 1966171168
  %v1252 = vunpack.c.0.s8 %v1251
  %v1253 = vlaneseq
  %v1254 = vshrl.u32 %v1253, 7
  %v1255 = vsub.s32 %v1252, %v1254
  %v1256 = vrot.slane %v1242, %v1255
  %v1257 = vcombine.high %v1249, %v1249
  %v1258 = vcombine.high %v1256, %v1256
  %v1260 = vunpack.c.l.s4 1966171168
  %v1261 = vunpack.c.0.s8 %v1260
  %v1262 = vlaneseq
  %v1263 = vshrl.u32 %v1262, 7
  %v1264 = vsub.s32 %v1261, %v1263
  %v1265 = vrot.slane %v1249, %v1264
  %v1267 = vunpack.c.l.s4 1966171168
  %v1268 = vunpack.c.0.s8 %v1267
  %v1269 = vlaneseq
  %v1270 = vshrl.u32 %v1269, 7
  %v1271 = vsub.s32 %v1268, %v1270
  %v1272 = vrot.slane %v1256, %v1271
  %v1274 = vunpack.c.l.s4 1966171168
  %v1275 = vunpack.c.0.s8 %v1274
  %v1276 = vlaneseq
  %v1277 = vshrl.u32 %v1276, 7
  %v1278 = vsub.s32 %v1275, %v1277
  %v1279 = vrot.slane %v1257, %v1278
  %v1281 = vunpack.c.l.s4 1966171168
  %v1282 = vunpack.c.0.s8 %v1281
  %v1283 = vlaneseq
  %v1284 = vshrl.u32 %v1283, 7
  %v1285 = vsub.s32 %v1282, %v1284
  %v1286 = vrot.slane %v1258, %v1285
  %v1287 = vcombine.high %v1265, %v1265
  %v1288 = vcombine.high %v1272, %v1272
  %v1289 = vcombine.high %v1279, %v1279
  %v1290 = vcombine.high %v1286, %v1286
  %v1291 = vcombine.low %v1183, %v1184
  %v1293 = vunpack.c.l.s4 1966171168
  %v1294 = vunpack.c.0.s8 %v1293
  %v1295 = vlaneseq
  %v1296 = vshrl.u32 %v1295, 7
  %v1297 = vsub.s32 %v1294, %v1296
  %v1298 = vrot.slane %v1291, %v1297
  %v1299 = vcombine.high %v1298, %v1298
  %v1301 = vunpack.c.l.s4 1966171168
  %v1302 = vunpack.c.0.s8 %v1301
  %v1303 = vlaneseq
  %v1304 = vshrl.u32 %v1303, 7
  %v1305 = vsub.s32 %v1302, %v1304
  %v1306 = vrot.slane %v1298, %v1305
  %v1308 = vunpack.c.l.s4 1966171168
  %v1309 = vunpack.c.0.s8 %v1308
  %v1310 = vlaneseq
  %v1311 = vshrl.u32 %v1310, 7
  %v1312 = vsub.s32 %v1309, %v1311
  %v1313 = vrot.slane %v1299, %v1312
  %v1330 = vmax.f32 %v1229, %v1237
  %v1331 = vmax.f32 %v1287, %v1289
  %v1332 = vmax.f32 %v1239, %v1222
  %v1333 = vmax.f32 %v1272, %v1286
  %v1334 = vmax.f32 %v1236, %v1238
  %v1335 = vmax.f32 %v1288, %v1290
  %v1336 = vmax.f32 %v1240, %v1265
  %v1337 = vmax.f32 %v1306, %v1313
  %v1338 = vlaneseq
  %v1339 = vshrl.u32 %v1338, 7
  %v1340 = vsub.s32 0, %v1339
  %v1341 = vrot.slane %v1215, %v1340
  %v1342 = vlaneseq
  %v1343 = vshrl.u32 %v1342, 7
  %v1344 = vsub.s32 1, %v1343
  %v1345 = vrot.slane %v1215, %v1344
  %v1346 = vlaneseq
  %v1347 = vshrl.u32 %v1346, 7
  %v1348 = vsub.s32 0, %v1347
  %v1349 = vrot.slane %v1279, %v1348
  %v1350 = vlaneseq
  %v1351 = vshrl.u32 %v1350, 7
  %v1352 = vsub.s32 1, %v1351
  %v1353 = vrot.slane %v1279, %v1352
  %v1360 = vlaneseq
  %v1361 = vshrl.u32 %v1360, 7
  %v1362 = vsub.s32 0, %v1361
  %v1363 = vrot.slane %v1330, %v1362
  %v1364 = vlaneseq
  %v1365 = vshrl.u32 %v1364, 7
  %v1366 = vsub.s32 1, %v1365
  %v1367 = vrot.slane %v1330, %v1366
  %v1368 = vlaneseq
  %v1369 = vshrl.u32 %v1368, 7
  %v1370 = vsub.s32 0, %v1369
  %v1371 = vrot.slane %v1331, %v1370
  %v1372 = vlaneseq
  %v1373 = vshrl.u32 %v1372, 7
  %v1374 = vsub.s32 1, %v1373
  %v1375 = vrot.slane %v1331, %v1374
  %v1382 = vlaneseq
  %v1383 = vshrl.u32 %v1382, 7
  %v1384 = vsub.s32 0, %v1383
  %v1385 = vrot.slane %v1332, %v1384
  %v1386 = vlaneseq
  %v1387 = vshrl.u32 %v1386, 7
  %v1388 = vsub.s32 1, %v1387
  %v1389 = vrot.slane %v1332, %v1388
  %v1390 = vlaneseq
  %v1391 = vshrl.u32 %v1390, 7
  %v1392 = vsub.s32 0, %v1391
  %v1393 = vrot.slane %v1333, %v1392
  %v1394 = vlaneseq
  %v1395 = vshrl.u32 %v1394, 7
  %v1396 = vsub.s32 1, %v1395
  %v1397 = vrot.slane %v1333, %v1396
  %v1404 = vlaneseq
  %v1405 = vshrl.u32 %v1404, 7
  %v1406 = vsub.s32 0, %v1405
  %v1407 = vrot.slane %v1334, %v1406
  %v1408 = vlaneseq
  %v1409 = vshrl.u32 %v1408, 7
  %v1410 = vsub.s32 1, %v1409
  %v1411 = vrot.slane %v1334, %v1410
  %v1412 = vlaneseq
  %v1413 = vshrl.u32 %v1412, 7
  %v1414 = vsub.s32 0, %v1413
  %v1415 = vrot.slane %v1335, %v1414
  %v1416 = vlaneseq
  %v1417 = vshrl.u32 %v1416, 7
  %v1418 = vsub.s32 1, %v1417
  %v1419 = vrot.slane %v1335, %v1418
  %v1426 = vlaneseq
  %v1427 = vshrl.u32 %v1426, 7
  %v1428 = vsub.s32 0, %v1427
  %v1429 = vrot.slane %v1336, %v1428
  %v1430 = vlaneseq
  %v1431 = vshrl.u32 %v1430, 7
  %v1432 = vsub.s32 1, %v1431
  %v1433 = vrot.slane %v1336, %v1432
  %v1434 = vlaneseq
  %v1435 = vshrl.u32 %v1434, 7
  %v1436 = vsub.s32 0, %v1435
  %v1437 = vrot.slane %v1337, %v1436
  %v1438 = vlaneseq
  %v1439 = vshrl.u32 %v1438, 7
  %v1440 = vsub.s32 1, %v1439
  %v1441 = vrot.slane %v1337, %v1440
  %v1446 = vsel %vm297, %v1341, %v1363
  %v1447 = vsel %vm297, %v1345, %v1367
  %v1448 = vsel %vm297, %v1349, %v1371
  %v1449 = vsel %vm297, %v1353, %v1375
  %v1450 = vsel %vm130, %v1446, %v1385
  %v1451 = vsel %vm130, %v1447, %v1389
  %v1452 = vsel %vm130, %v1448, %v1393
  %v1453 = vsel %vm130, %v1449, %v1397
  %v1454 = vsel %vm302, %v1450, %v1407
  %v1455 = vsel %vm302, %v1451, %v1411
  %v1456 = vsel %vm302, %v1452, %v1415
  %v1457 = vsel %vm302, %v1453, %v1419
  %v1458 = vsel %vm305, %v1454, %v1429
  %v1459 = vsel %vm305, %v1455, %v1433
  %v1460 = vsel %vm305, %v1456, %v1437
  %v1461 = vsel %vm305, %v1457, %v1441
  %1464 = vrot.lane.b32.xlu0 %v1458, 112
  %v1465 = vpop.permute.xlu0 %1464
  %1466 = vrot.lane.b32.xlu0 %v1460, 112
  %v1467 = vpop.permute.xlu0 %1466
  %v1470 = vmax.f32 %v1458, %v1465
  %v1471 = vmax.f32 %v1460, %v1467
  %1474 = vrot.lane.b32.xlu0 %v1459, 112
  %v1475 = vpop.permute.xlu0 %1474
  %1476 = vrot.lane.b32.xlu0 %v1461, 112
  %v1477 = vpop.permute.xlu0 %1476
  %v1480 = vmax.f32 %v1458, %v1475
  %v1481 = vmax.f32 %v1460, %v1477
  %1484 = vrot.lane.b32.xlu0 %v1470, 112
  %v1485 = vpop.permute.xlu0 %1484
  %1486 = vrot.lane.b32.xlu0 %v1471, 112
  %v1487 = vpop.permute.xlu0 %1486
  %1490 = vrot.lane.b32.xlu0 %v1470, 96
  %v1491 = vpop.permute.xlu0 %1490
  %1492 = vrot.lane.b32.xlu0 %v1471, 96
  %v1493 = vpop.permute.xlu0 %1492
  %1498 = vrot.lane.b32.xlu0 %v1480, 80
  %v1499 = vpop.permute.xlu0 %1498
  %1500 = vrot.lane.b32.xlu0 %v1481, 80
  %v1501 = vpop.permute.xlu0 %1500
  %v1504 = vsel %vm426, %v1458, %v1470
  %v1505 = vsel %vm426, %v1460, %v1471
  %v1506 = vsel %vm436, %v1504, %v1485
  %v1507 = vsel %vm436, %v1505, %v1487
  %v1508 = vsel %vm446, %v1506, %v1491
  %v1509 = vsel %vm446, %v1507, %v1493
  %v1510 = vsel %vm456, %v1508, %v1499
  %v1511 = vsel %vm456, %v1509, %v1501
  %v1513 = vunpack.c.l.s4 1983009808
  %v1514 = vunpack.c.0.s8 %v1513
  %v1515 = vlaneseq
  %v1516 = vshrl.u32 %v1515, 7
  %v1517 = vsub.s32 %v1514, %v1516
  %v1518 = vrot.slane %v1510, %v1517
  %v1519 = vcombine.high %v1510, 0.0
  %v1521 = vunpack.c.l.s4 1983009808
  %v1522 = vunpack.c.0.s8 %v1521
  %v1523 = vlaneseq
  %v1524 = vshrl.u32 %v1523, 7
  %v1525 = vsub.s32 %v1522, %v1524
  %v1526 = vrot.slane %v1511, %v1525
  %v1527 = vcombine.high %v1511, 0.0
  %v1528 = vcombine.low %v1518, %v1526
  %v1529 = vcombine.high %v1518, %v1526
  %v1531 = vunpack.c.l.s4 1934713408
  %v1532 = vunpack.c.0.s8 %v1531
  %v1533 = vlaneseq
  %v1534 = vshrl.u32 %v1533, 7
  %v1535 = vsub.s32 %v1532, %v1534
  %v1536 = vrot.slane %v1528, %v1535
  %v1538 = vunpack.c.l.s4 1934713408
  %v1539 = vunpack.c.0.s8 %v1538
  %v1540 = vlaneseq
  %v1541 = vshrl.u32 %v1540, 7
  %v1542 = vsub.s32 %v1539, %v1541
  %v1543 = vrot.slane %v1529, %v1542
  %v1544 = vcombine.low %v1519, %v1527
  %v1545 = vcombine.high %v1536, 0.0
  %v1546 = vcombine.high %v1543, 0.0
  %v1548 = vunpack.c.l.s4 1934713408
  %v1549 = vunpack.c.0.s8 %v1548
  %v1550 = vlaneseq
  %v1551 = vshrl.u32 %v1550, 7
  %v1552 = vsub.s32 %v1549, %v1551
  %v1553 = vrot.slane %v1544, %v1552
  %1555 = vrot.lane.b32.xlu0 %v1545, 80
  %v1556 = vpop.permute.xlu0 %1555
  %1559 = vrot.lane.b32.xlu0 %v1543, 32
  %v1560 = vpop.permute.xlu0 %1559
  %1563 = vrot.lane.b32.xlu0 %v1546, 112
  %v1564 = vpop.permute.xlu0 %1563
  %1567 = vrot.lane.b32.xlu0 %v1553, 64
  %v1568 = vpop.permute.xlu0 %1567
  %v1570 = vsel %vm481, %v1536, %v1556
  %v1571 = vsel %vm436, %v1556, %v1560
  %vm1572 = vcmask 916480
  %v1573 = vsel %vm1572, %v1571, %v1564
  %v1574 = vsel %vm456, %v1564, %v1568
  %v1575 = vld [vmem:[%s7] sm:$0xff]
  %v1576 = vld [vmem:[%s7 + $0x8] sm:$0xff]
  %v1577 = vld [vmem:[%s7 + $0x10] sm:$0xff]
  %v1578 = vld [vmem:[%s7 + $0x18] sm:$0xff]
  %v1579 = vld [vmem:[%s7 + $0x20] sm:$0xff]
  %v1580 = vld [vmem:[%s7 + $0x28] sm:$0xff]
  %v1581 = vld [vmem:[%s7 + $0x30] sm:$0xff]
  %v1582 = vld [vmem:[%s7 + $0x38] sm:$0xff]
  %v1583 = vld [vmem:[%s7 + $0x40] sm:$0xff]
  %v1584 = vld [vmem:[%s7 + $0x48] sm:$0xff]
  %v1585 = vld [vmem:[%s7 + $0x50] sm:$0xff]
  %v1586 = vld [vmem:[%s7 + $0x58] sm:$0xff]
  %v1587 = vld [vmem:[%s7 + $0x60] sm:$0xff]
  %v1588 = vld [vmem:[%s7 + $0x68] sm:$0xff]
  %v1589 = vld [vmem:[%s7 + $0x70] sm:$0xff]
  %v1590 = vld [vmem:[%s7 + $0x78] sm:$0xff]
  %v1591 = vld [vmem:[%s7 + $0x80] sm:$0xff]
  %v1592 = vld [vmem:[%s7 + $0x88] sm:$0xff]
  %v1593 = vld [vmem:[%s7 + $0x90] sm:$0xff]
  %v1594 = vld [vmem:[%s7 + $0x98] sm:$0xff]
  %v1595 = vld [vmem:[%s7 + $0xa0] sm:$0xff]
  %v1596 = vld [vmem:[%s7 + $0xa8] sm:$0xff]
  %v1597 = vld [vmem:[%s7 + $0xb0] sm:$0xff]
  %v1598 = vld [vmem:[%s7 + $0xb8] sm:$0xff]
  %v1599 = vld [vmem:[%s7 + $0xc0] sm:$0xff]
  %v1600 = vld [vmem:[%s7 + $0xc8] sm:$0xff]
  %v1601 = vld [vmem:[%s7 + $0xd0] sm:$0xff]
  %v1602 = vld [vmem:[%s7 + $0xd8] sm:$0xff]
  %v1603 = vld [vmem:[%s7 + $0xe0] sm:$0xff]
  %v1604 = vld [vmem:[%s7 + $0xe8] sm:$0xff]
  %v1605 = vld [vmem:[%s7 + $0xf0] sm:$0xff]
  %v1606 = vld [vmem:[%s7 + $0xf8] sm:$0xff]
  %v1607 = vld [vmem:[%s7 + $0x100] sm:$0xff]
  %v1608 = vld [vmem:[%s7 + $0x108] sm:$0xff]
  %v1609 = vld [vmem:[%s7 + $0x110] sm:$0xff]
  %v1610 = vld [vmem:[%s7 + $0x118] sm:$0xff]
  %v1611 = vld [vmem:[%s7 + $0x120] sm:$0xff]
  %v1612 = vld [vmem:[%s7 + $0x128] sm:$0xff]
  %v1613 = vld [vmem:[%s7 + $0x130] sm:$0xff]
  %v1614 = vld [vmem:[%s7 + $0x138] sm:$0xff]
  %v1615 = vld [vmem:[%s7 + $0x140] sm:$0xff]
  %v1616 = vld [vmem:[%s7 + $0x148] sm:$0xff]
  %v1617 = vld [vmem:[%s7 + $0x150] sm:$0xff]
  %v1618 = vld [vmem:[%s7 + $0x158] sm:$0xff]
  %v1619 = vld [vmem:[%s7 + $0x160] sm:$0xff]
  %v1620 = vld [vmem:[%s7 + $0x168] sm:$0xff]
  %v1621 = vld [vmem:[%s7 + $0x170] sm:$0xff]
  %v1622 = vld [vmem:[%s7 + $0x178] sm:$0xff]
  %v1623 = vld [vmem:[%s7 + $0x180] sm:$0xff]
  %v1624 = vld [vmem:[%s7 + $0x188] sm:$0xff]
  %v1625 = vld [vmem:[%s8] sm:$0x1]
  %v1627 = vlaneseq
  %v1628 = vshrl.u32 %v1627, 7
  %v1629 = vsub.s32 0, %v1628
  %v1630 = vrot.slane %v1625, %v1629
  %v1632 = vsel %vm426, %v1568, 0
  %1634 = vmatprep.subr.mxu0 0.0
  %1635 = vmatpush1.msra.mxu0 %v1590
  %1636 = vmatprep.subr.mxu0 0.0
  %1637 = vmatpush1.msra.mxu0 %v1589
  %1638 = vmatprep.subr.mxu0 0.0
  %1639 = vmatpush1.msra.mxu0 %v1588
  %1640 = vmatprep.subr.mxu0 0.0
  %1641 = vmatpush1.msra.mxu0 %v1587
  %1642 = vmatprep.subr.mxu0 0.0
  %1643 = vmatpush1.msra.mxu0 %v1586
  %1644 = vmatprep.subr.mxu0 0.0
  %1645 = vmatpush1.msra.mxu0 %v1585
  %1646 = vmatprep.subr.mxu0 0.0
  %1647 = vmatpush1.msra.mxu0 %v1584
  %1648 = vmatprep.subr.mxu0 0.0
  %1649 = vmatpush1.msra.mxu0 %v1583
  %1650 = vmatprep.subr.mxu0 0.0
  %1651 = vmatpush1.msra.mxu0 %v1582
  %1652 = vmatprep.subr.mxu0 0.0
  %1653 = vmatpush1.msra.mxu0 %v1581
  %1654 = vmatprep.subr.mxu0 0.0
  %1655 = vmatpush1.msra.mxu0 %v1580
  %1656 = vmatprep.subr.mxu0 0.0
  %1657 = vmatpush1.msra.mxu0 %v1579
  %1658 = vmatprep.subr.mxu0 0.0
  %1659 = vmatpush1.msra.mxu0 %v1578
  %1660 = vmatprep.subr.mxu0 0.0
  %1661 = vmatpush1.msra.mxu0 %v1577
  %1662 = vmatprep.subr.mxu0 0.0
  %1663 = vmatpush1.msra.mxu0 %v1576
  %1664 = vmatprep.subr.mxu0 0.0
  %1665 = vmatpush1.msra.mxu0 %v1575
  %1666 = vmatprep.subr.mxu0 0.0
  %1667 = vmatpush2.msra.mxu0 %v1606
  %1668 = vmatprep.subr.mxu0 0.0
  %1669 = vmatpush2.msra.mxu0 %v1605
  %1670 = vmatprep.subr.mxu0 0.0
  %1671 = vmatpush2.msra.mxu0 %v1604
  %1672 = vmatprep.subr.mxu0 0.0
  %1673 = vmatpush2.msra.mxu0 %v1603
  %1674 = vmatprep.subr.mxu0 0.0
  %1675 = vmatpush2.msra.mxu0 %v1602
  %1676 = vmatprep.subr.mxu0 0.0
  %1677 = vmatpush2.msra.mxu0 %v1601
  %1678 = vmatprep.subr.mxu0 0.0
  %1679 = vmatpush2.msra.mxu0 %v1600
  %1680 = vmatprep.subr.mxu0 0.0
  %1681 = vmatpush2.msra.mxu0 %v1599
  %1682 = vmatprep.subr.mxu0 0.0
  %1683 = vmatpush2.msra.mxu0 %v1598
  %1684 = vmatprep.subr.mxu0 0.0
  %1685 = vmatpush2.msra.mxu0 %v1597
  %1686 = vmatprep.subr.mxu0 0.0
  %1687 = vmatpush2.msra.mxu0 %v1596
  %1688 = vmatprep.subr.mxu0 0.0
  %1689 = vmatpush2.msra.mxu0 %v1595
  %1690 = vmatprep.subr.mxu0 0.0
  %1691 = vmatpush2.msra.mxu0 %v1594
  %1692 = vmatprep.subr.mxu0 0.0
  %1693 = vmatpush2.msra.mxu0 %v1593
  %1694 = vmatprep.subr.mxu0 0.0
  %1695 = vmatpush2.msra.mxu0 %v1592
  %1696 = vmatprep.subr.mxu0 0.0
  %1697 = vmatpush2.msra.mxu0 %v1591
  %1698 = vmatprep.mubr.f32.mxu0 %v1573
  %1699 = vmatmul.mubr.f32.gmra.mxu0 %v1570
  %v1700 = vpop.f32.mrf.mxu0
  %v1701 = vadd.f32 %v1630, %v1700
  %v1702 = vpop.f32.mrf.mxu0
  %1703 = vdwg.mxu0
  %1704 = vmatprep.subr.mxu0 0.0
  %1705 = vmatpush1.msra.mxu0 %v1622
  %1706 = vmatprep.subr.mxu0 0.0
  %1707 = vmatpush1.msra.mxu0 %v1621
  %1708 = vmatprep.subr.mxu0 0.0
  %1709 = vmatpush1.msra.mxu0 %v1620
  %1710 = vmatprep.subr.mxu0 0.0
  %1711 = vmatpush1.msra.mxu0 %v1619
  %1712 = vmatprep.subr.mxu0 0.0
  %1713 = vmatpush1.msra.mxu0 %v1618
  %1714 = vmatprep.subr.mxu0 0.0
  %1715 = vmatpush1.msra.mxu0 %v1617
  %1716 = vmatprep.subr.mxu0 0.0
  %1717 = vmatpush1.msra.mxu0 %v1616
  %1718 = vmatprep.subr.mxu0 0.0
  %1719 = vmatpush1.msra.mxu0 %v1615
  %1720 = vmatprep.subr.mxu0 0.0
  %1721 = vmatpush1.msra.mxu0 %v1614
  %1722 = vmatprep.subr.mxu0 0.0
  %1723 = vmatpush1.msra.mxu0 %v1613
  %1724 = vmatprep.subr.mxu0 0.0
  %1725 = vmatpush1.msra.mxu0 %v1612
  %1726 = vmatprep.subr.mxu0 0.0
  %1727 = vmatpush1.msra.mxu0 %v1611
  %1728 = vmatprep.subr.mxu0 0.0
  %1729 = vmatpush1.msra.mxu0 %v1610
  %1730 = vmatprep.subr.mxu0 0.0
  %1731 = vmatpush1.msra.mxu0 %v1609
  %1732 = vmatprep.subr.mxu0 0.0
  %1733 = vmatpush1.msra.mxu0 %v1608
  %1734 = vmatprep.subr.mxu0 0.0
  %1735 = vmatpush1.msra.mxu0 %v1607
  %1736 = vmatprep.subr.mxu0 0.0
  %1737 = vmatpush2.msra.mxu0 0.0
  %1738 = vmatprep.subr.mxu0 0.0
  %1739 = vmatpush2.msra.mxu0 0.0
  %1740 = vmatprep.subr.mxu0 0.0
  %1741 = vmatpush2.msra.mxu0 0.0
  %1742 = vmatprep.subr.mxu0 0.0
  %1743 = vmatpush2.msra.mxu0 0.0
  %1744 = vmatprep.subr.mxu0 0.0
  %1745 = vmatpush2.msra.mxu0 0.0
  %1746 = vmatprep.subr.mxu0 0.0
  %1747 = vmatpush2.msra.mxu0 0.0
  %1748 = vmatprep.subr.mxu0 0.0
  %1749 = vmatpush2.msra.mxu0 0.0
  %1750 = vmatprep.subr.mxu0 0.0
  %1751 = vmatpush2.msra.mxu0 0.0
  %1752 = vmatprep.subr.mxu0 0.0
  %1753 = vmatpush2.msra.mxu0 0.0
  %1754 = vmatprep.subr.mxu0 0.0
  %1755 = vmatpush2.msra.mxu0 0.0
  %1756 = vmatprep.subr.mxu0 0.0
  %1757 = vmatpush2.msra.mxu0 0.0
  %1758 = vmatprep.subr.mxu0 0.0
  %1759 = vmatpush2.msra.mxu0 0.0
  %1760 = vmatprep.subr.mxu0 0.0
  %1761 = vmatpush2.msra.mxu0 0.0
  %1762 = vmatprep.subr.mxu0 0.0
  %1763 = vmatpush2.msra.mxu0 0.0
  %1764 = vmatprep.subr.mxu0 0.0
  %1765 = vmatpush2.msra.mxu0 %v1624
  %1766 = vmatprep.subr.mxu0 0.0
  %1767 = vmatpush2.msra.mxu0 %v1623
  %1768 = vmatprep.mubr.f32.mxu0 %v1632
  %1769 = vmatmul.mubr.f32.gmra.mxu0 %v1574
  %v1770 = vpop.f32.mrf.mxu0
  %v1771 = vadd.f32 %v1701, %v1770
  %v1772 = vpop.f32.mrf.mxu0
  %1773 = vdwg.mxu0
  %1774 = vst [vmem:[%s9] sm:$0x3] %v1771
  // Predicated region
  $region38: #{forward.1} parent=0 // pred_check
    _
  $region39: #{forward.1} parent=0 // pred_check_branch
    %1776 = sbr.rel (0) target = $region41
  $region40: #{forward.1} parent=0 // pred_region
    _
  $region41: #{forward.1} parent=0 // pred_fallthru
    _
  // Predicated region
  $region42: #{forward.1} parent=0 // pred_check
    _
  $region43: #{forward.1} parent=0 // pred_check_branch
    %1778 = sbr.rel (0) target = $region45
  $region44: #{forward.1} parent=0 // pred_region
    _
  $region45: #{forward.1} parent=0 // pred_fallthru
    _

</llo_original>
